<compile_context>
chip_gen: v6e
topology: v6e:2x2x1
jax: 0.10.0
libtpu: 0.0.40
codegen_flags: <defaults>
</compile_context>

<pallas_src>
import functools

import jax
import jax.numpy as jnp
from jax.experimental import pallas as pl
from jax.experimental.pallas import tpu as pltpu


# --------------------------------------------------------------------------------------
# Fused kernel: conv1(stride)+bn1+relu -> VMEM scratch -> conv2(1)+bn2(+relu) -> HBM
# --------------------------------------------------------------------------------------
def _fused_double_conv_kernel(x_ref, w1_ref, s1_ref, w2_ref, s2_ref, o_ref, y1_scr,
                              *, stride, use_act):
    # x_ref  : (s*s, TRq, Wq, Cin)   bf16, phase-split zero-padded input rows for this tile
    # w1_ref : (3, 3*Cin, Cmid)      bf16, dh-indexed, dw concatenated along K, BN folded
    # s1_ref : (1, Cmid)             f32,  (bias - mean)*scale + beta
    # w2_ref : (3, 3*Cmid, Cout)     bf16
    # s2_ref : (1, Cout)             f32
    # o_ref  : (TR, Wo, Cout)        f32, unpadded output row tile (aligned full-block store)
    # y1_scr : (TR+2, Wo+2, Cmid)    bf16 VMEM scratch: conv1 activation + zero halo
    s = stride
    tr, wo, cout = o_ref.shape
    cin = x_ref.shape[-1]
    cmid = y1_scr.shape[-1]
    rows1 = tr + 2                       # conv1 rows needed by this conv2 row tile (+halo)

    # ---- stage 1: conv1 (stride s) + bn1 + ReLU -> VMEM scratch (bf16) ----------------
    acc1 = jnp.zeros((rows1 * wo, cmid), jnp.float32)
    for dh in range(3):
        parts = [
            x_ref[(dh % s) * s + (dw % s),
                  dh // s: dh // s + rows1,
                  dw // s: dw // s + wo, :]
            for dw in range(3)
        ]
        patch = jnp.concatenate(parts, axis=-1).reshape(rows1 * wo, 3 * cin)
        acc1 = acc1 + jnp.dot(patch, w1_ref[dh], preferred_element_type=jnp.float32)
    y1 = jnp.maximum(acc1 + s1_ref[...], 0.0)                    # f32 epilogue
    y1_scr[:, 1:wo + 1, :] = y1.reshape(rows1, wo, cmid).astype(y1_scr.dtype)

    # Zero halo: left/right columns always; top/bottom rows only at the image border.
    y1_scr[:, 0:1, :] = jnp.zeros((rows1, 1, cmid), y1_scr.dtype)
    y1_scr[:, wo + 1:wo + 2, :] = jnp.zeros((rows1, 1, cmid), y1_scr.dtype)

    r = pl.program_id(1)

    @pl.when(r == 0)
    def _():
        y1_scr[0:1, :, :] = jnp.zeros((1, wo + 2, cmid), y1_scr.dtype)

    @pl.when(r == pl.num_programs(1) - 1)
    def _():
        y1_scr[rows1 - 1:rows1, :, :] = jnp.zeros((1, wo + 2, cmid), y1_scr.dtype)

    # ---- stage 2: conv2 (stride 1) + bn2 (+ ReLU) -> HBM output tile ------------------
    acc2 = jnp.zeros((tr * wo, cout), jnp.float32)
    for dh in range(3):
        parts = [y1_scr[dh:dh + tr, dw:dw + wo, :] for dw in range(3)]
        patch = jnp.concatenate(parts, axis=-1).reshape(tr * wo, 3 * cmid)
        acc2 = acc2 + jnp.dot(patch, w2_ref[dh], preferred_element_type=jnp.float32)
    out = acc2 + s2_ref[...]
    if use_act:
        out = jnp.maximum(out, 0.0)
    o_ref[...] = out.reshape(tr, wo, cout).astype(o_ref.dtype)


# --------------------------------------------------------------------------------------
# Host-side helpers
# --------------------------------------------------------------------------------------
def _fold_conv_bn(w_oihw, bias, gamma, beta, mean, var, eps):
    """Fold conv bias + inference BatchNorm into bf16 (3, 3*Cin, Cout) weights + f32 shift."""
    cout_, cin_ = w_oihw.shape[0], w_oihw.shape[1]
    scale = gamma / jnp.sqrt(var + eps)                               # (cout,)
    w_t = jnp.transpose(w_oihw, (2, 3, 1, 0)) * scale[None, None, None, :]   # (kh,kw,cin,cout)
    w_taps = w_t.reshape(3, 3 * cin_, cout_).astype(jnp.bfloat16)     # dw-major K concat
    shift = ((bias - mean) * scale + beta).reshape(1, cout_).astype(jnp.float32)
    return w_taps, shift


def _pick_row_tile(ho, wo, cin, cmid, cout, stride, n,
                   budget_bytes=32 * 1024 * 1024, row_cap=128):
    """Largest divisor of `ho` whose fused per-step working set fits the VMEM budget."""
    s = stride
    qex = 2 // s
    wq = wo + 1 + qex

    def vmem_est(tr):
        trq = tr + 2 + qex
        in_blk = s * s * trq * wq * cin * 2                       # bf16 input block
        out_blk = tr * wo * cout * 4                               # f32 output block
        scr = (tr + 2) * (wo + 2) * cmid * 2                       # bf16 conv1 scratch
        acc = (tr + 2) * wo * cmid * 4 + tr * wo * cout * 4        # f32 accumulators
        wts = 2 * 3 * 3 * (cin * cmid + cmid * cout) * 2           # bf16 weights (x2 bufs)
        return 2 * in_blk + 2 * out_blk + scr + acc + wts

    divs = sorted(d for d in range(1, ho + 1) if ho % d == 0)
    fits = [d for d in divs if d <= row_cap and vmem_est(d) <= budget_bytes]
    tr = max(fits) if fits else divs[0]
    # Give dual-TensorCore chips (v7x) at least 2 parallel grid steps when possible.
    if n * (ho // tr) < 2:
        smaller = [d for d in divs if ho // d >= 2 and vmem_est(d) <= budget_bytes]
        if smaller:
            tr = max(smaller)
    return tr


@functools.partial(jax.jit, static_argnames=("stride", "use_act", "eps"))
def double_conv_block(x_nchw,
                      conv1_w, conv1_b, bn1_g, bn1_b, bn1_m, bn1_v,
                      conv2_w, conv2_b, bn2_g, bn2_b, bn2_m, bn2_v,
                      *, stride=1, use_act=True, eps=1e-5):
    """Forward of PyTorch DoubleConvBlock (BatchNorm in inference mode), NCHW in/out."""
    n, cin, h, w = x_nchw.shape
    cmid = conv1_w.shape[0]
    cout = conv2_w.shape[0]
    s = int(stride)
    assert h % s == 0 and w % s == 0, "H and W must be divisible by stride"
    ho, wo = h // s, w // s
    qex = 2 // s

    # Fold conv bias + inference BatchNorm into bf16 weights and an f32 per-channel shift.
    # TODO(synk): training-mode BatchNorm (batch statistics) is not supported here.
    w1_taps, shift1 = _fold_conv_bn(conv1_w, conv1_b, bn1_g, bn1_b, bn1_m, bn1_v, eps)
    w2_taps, shift2 = _fold_conv_bn(conv2_w, conv2_b, bn2_g, bn2_b, bn2_m, bn2_v, eps)

    # NCHW -> NHWC once (channels on lanes for the MXU matmuls), bf16 activations.
    x_nhwc = jnp.transpose(x_nchw, (0, 2, 3, 1)).astype(jnp.bfloat16)

    # Zero-pad so every conv1 row needed by conv2's halo reads in-bounds, then phase-split
    # (space-to-batch) so stride-s taps become static contiguous slices.
    hq, wq = ho + 2 + qex, wo + 1 + qex
    pad_t, pad_b = s + 1, s * hq - h - (s + 1)
    pad_l, pad_r = 1, s * wq - w - 1
    xp = jnp.pad(x_nhwc, ((0, 0), (pad_t, pad_b), (pad_l, pad_r), (0, 0)))
    xph = xp.reshape(n, hq, s, wq, s, cin)
    xph = jnp.transpose(xph, (0, 2, 4, 1, 3, 5)).reshape(n, s * s, hq, wq, cin)

    # Output-row tiling. Overlapping input row windows (2-3 halo rows) are materialized
    # host-side so the kernel keeps Pallas' automatic double-buffered pipelining.
    tr = _pick_row_tile(ho, wo, cin, cmid, cout, s, n)
    nrt = ho // tr
    trq = tr + 2 + qex
    x_tiles = jnp.stack([xph[:, :, r * tr:r * tr + trq] for r in range(nrt)], axis=1)
    x_tiles = x_tiles.reshape(n * nrt, s * s, trq, wq, cin)

    kernel = functools.partial(_fused_double_conv_kernel, stride=s, use_act=use_act)

    flops = 2 * 9 * n * ho * wo * (cin * cmid + cmid * cout)
    bytes_accessed = (x_tiles.size * 2 + w1_taps.size * 2 + w2_taps.size * 2
                      + shift1.size * 4 + shift2.size * 4 + n * ho * wo * cout * 4)

    out_nhwc = pl.pallas_call(
        kernel,
        out_shape=jax.ShapeDtypeStruct((n, ho, wo, cout), jnp.float32),
        grid_spec=pltpu.PrefetchScalarGridSpec(
            num_scalar_prefetch=0,
            grid=(n, nrt),
            in_specs=[
                pl.BlockSpec((None, s * s, trq, wq, cin),
                             lambda i, r: (i * nrt + r, 0, 0, 0, 0)),
                pl.BlockSpec((3, 3 * cin, cmid), lambda i, r: (0, 0, 0)),
                pl.BlockSpec((1, cmid), lambda i, r: (0, 0)),
                pl.BlockSpec((3, 3 * cmid, cout), lambda i, r: (0, 0, 0)),
                pl.BlockSpec((1, cout), lambda i, r: (0, 0)),
            ],
            out_specs=pl.BlockSpec((None, tr, wo, cout), lambda i, r: (i, r, 0, 0)),
            scratch_shapes=[pltpu.VMEM((tr + 2, wo + 2, cmid), jnp.bfloat16)],
        ),
        compiler_params=pltpu.CompilerParams(
            dimension_semantics=("parallel", "parallel"),
            vmem_limit_bytes=48 * 1024 * 1024),
        cost_estimate=pl.CostEstimate(flops=flops, transcendentals=0,
                                      bytes_accessed=bytes_accessed),
    )(x_tiles, w1_taps, shift1, w2_taps, shift2)

    return jnp.transpose(out_nhwc, (0, 3, 1, 2))                  # back to NCHW


# --------------------------------------------------------------------------------------
# Pure-JAX f32 reference (matches the PyTorch module in eval mode)
# --------------------------------------------------------------------------------------
def _reference(x, w1, b1, g1, be1, m1, v1, w2, b2, g2, be2, m2, v2,
               *, stride, use_act, eps=1e-5):
    def conv(xx, wgt, b, s):
        y = jax.lax.conv_general_dilated(
            xx, wgt, window_strides=(s, s), padding=((1, 1), (1, 1)),
            dimension_numbers=("NCHW", "OIHW", "NCHW"))
        return y + b[None, :, None, None]

    def bn(xx, g, be, m, v):
        sc = g / jnp.sqrt(v + eps)
        return (xx - m[None, :, None, None]) * sc[None, :, None, None] \
            + be[None, :, None, None]

    y = jax.nn.relu(bn(conv(x, w1, b1, stride), g1, be1, m1, v1))
    y = bn(conv(y, w2, b2, 1), g2, be2, m2, v2)
    if use_act:
        y = jax.nn.relu(y)
    return y


if __name__ == "__main__":
    key = jax.random.PRNGKey(0)
    ks = jax.random.split(key, 13)

    N, Cin, H, W = 2, 4, 16, 16
    Cmid, Cout = 8, 16

    x = jax.random.normal(ks[0], (N, Cin, H, W), jnp.float32)

    w1 = jax.random.normal(ks[1], (Cmid, Cin, 3, 3), jnp.float32) * 0.2
    b1 = jax.random.normal(ks[2], (Cmid,), jnp.float32) * 0.1
    g1 = 1.0 + 0.1 * jax.random.normal(ks[3], (Cmid,), jnp.float32)
    be1 = 0.1 * jax.random.normal(ks[4], (Cmid,), jnp.float32)
    m1 = 0.1 * jax.random.normal(ks[5], (Cmid,), jnp.float32)
    v1 = 0.5 + jnp.abs(jax.random.normal(ks[6], (Cmid,), jnp.float32))

    w2 = jax.random.normal(ks[7], (Cout, Cmid, 3, 3), jnp.float32) * 0.2
    b2 = jax.random.normal(ks[8], (Cout,), jnp.float32) * 0.1
    g2 = 1.0 + 0.1 * jax.random.normal(ks[9], (Cout,), jnp.float32)
    be2 = 0.1 * jax.random.normal(ks[10], (Cout,), jnp.float32)
    m2 = 0.1 * jax.random.normal(ks[11], (Cout,), jnp.float32)
    v2 = 0.5 + jnp.abs(jax.random.normal(ks[12], (Cout,), jnp.float32))

    for stride, use_act in ((2, True), (1, False)):
        out = double_conv_block(x, w1, b1, g1, be1, m1, v1,
                                w2, b2, g2, be2, m2, v2,
                                stride=stride, use_act=use_act)
        out = jax.block_until_ready(out)
        ref = _reference(x, w1, b1, g1, be1, m1, v1, w2, b2, g2, be2, m2, v2,
                         stride=stride, use_act=use_act)
        assert out.shape == (N, Cout, H // stride, W // stride), out.shape
        # bf16 activations/weights (f32 accumulation) -> loosened tolerance vs pure f32.
        err = float(jnp.max(jnp.abs(out - ref)))
        assert err < 1e-1, f"stride={stride} use_act={use_act}: max abs err = {err}"

    print("KERNEL_OK")
</pallas_src>

<mosaic_0001>
module attributes {stable_mosaic.version = 11 : i64} {
  func.func @_fused_double_conv_kernel(%arg0: i32, %arg1: i32, %arg2: memref<1x4x11x10x4xbf16, #tpu.memory_space<vmem>>, %arg3: memref<3x12x8xbf16, #tpu.memory_space<vmem>>, %arg4: memref<1x8xf32, #tpu.memory_space<vmem>>, %arg5: memref<3x24x16xbf16, #tpu.memory_space<vmem>>, %arg6: memref<1x16xf32, #tpu.memory_space<vmem>>, %arg7: memref<1x8x8x16xf32, #tpu.memory_space<vmem>>, %arg8: memref<10x10x8xbf16, #tpu.memory_space<vmem>>) attributes {dimension_semantics = [#tpu.dimension_semantics<parallel>, #tpu.dimension_semantics<parallel>], iteration_bounds = array<i64: 2, 1>, scalar_prefetch = 0 : i64, scratch_operands = 1 : i64, tpu.core_type = #tpu.core_type<tc>, window_params = [{transform_indices = @transform_0, window_bounds = array<i64: 1, 4, 11, 10, 4>}, {pipeline_mode = #tpu.pipeline_mode<synchronous>, transform_indices = @transform_1, window_bounds = array<i64: 3, 12, 8>}, {pipeline_mode = #tpu.pipeline_mode<synchronous>, transform_indices = @transform_2, window_bounds = array<i64: 1, 8>}, {pipeline_mode = #tpu.pipeline_mode<synchronous>, transform_indices = @transform_3, window_bounds = array<i64: 3, 24, 16>}, {pipeline_mode = #tpu.pipeline_mode<synchronous>, transform_indices = @transform_4, window_bounds = array<i64: 1, 16>}, {transform_indices = @transform_5, window_bounds = array<i64: 1, 8, 8, 16>}]} {
    %cst = arith.constant 0.000000e+00 : f32
    %0 = vector.broadcast %cst : f32 to vector<80x8xf32>
    %c0 = arith.constant 0 : index
    %c0_0 = arith.constant 0 : index
    %c0_1 = arith.constant 0 : index
    %c0_2 = arith.constant 0 : index
    %c0_3 = arith.constant 0 : index
    %1 = vector.load %arg2[%c0, %c0_0, %c0_1, %c0_2, %c0_3] : memref<1x4x11x10x4xbf16, #tpu.memory_space<vmem>>, vector<1x1x10x8x4xbf16>
    %2 = vector.shape_cast %1 : vector<1x1x10x8x4xbf16> to vector<10x8x4xbf16>
    %c0_4 = arith.constant 0 : index
    %c1 = arith.constant 1 : index
    %c0_5 = arith.constant 0 : index
    %c0_6 = arith.constant 0 : index
    %c0_7 = arith.constant 0 : index
    %3 = vector.load %arg2[%c0_4, %c1, %c0_5, %c0_6, %c0_7] : memref<1x4x11x10x4xbf16, #tpu.memory_space<vmem>>, vector<1x1x10x8x4xbf16>
    %4 = vector.shape_cast %3 : vector<1x1x10x8x4xbf16> to vector<10x8x4xbf16>
    %c0_8 = arith.constant 0 : index
    %c0_9 = arith.constant 0 : index
    %c0_10 = arith.constant 0 : index
    %c1_11 = arith.constant 1 : index
    %c0_12 = arith.constant 0 : index
    %5 = vector.load %arg2[%c0_8, %c0_9, %c0_10, %c1_11, %c0_12] : memref<1x4x11x10x4xbf16, #tpu.memory_space<vmem>>, vector<1x1x10x8x4xbf16>
    %6 = vector.shape_cast %5 : vector<1x1x10x8x4xbf16> to vector<10x8x4xbf16>
    %7 = tpu.concatenate %2, %4, %6 in 2 : vector<10x8x4xbf16>, vector<10x8x4xbf16>, vector<10x8x4xbf16> -> vector<10x8x12xbf16>
    %8 = vector.shape_cast %7 : vector<10x8x12xbf16> to vector<80x12xbf16>
    %c0_13 = arith.constant 0 : index
    %c0_14 = arith.constant 0 : index
    %c0_15 = arith.constant 0 : index
    %9 = vector.load %arg3[%c0_13, %c0_14, %c0_15] : memref<3x12x8xbf16, #tpu.memory_space<vmem>>, vector<1x12x8xbf16>
    %10 = vector.shape_cast %9 : vector<1x12x8xbf16> to vector<12x8xbf16>
    %cst_16 = arith.constant dense<0.000000e+00> : vector<80x8xf32>
    %11 = tpu.matmul %8, %10, %cst_16 {dimension_numbers = #tpu.dot_dimension_numbers<[1], [0], [0], [1], [0, 0, 1, 1], [], []>} : vector<80x12xbf16>, vector<12x8xbf16>, vector<80x8xf32> -> vector<80x8xf32>
    %12 = arith.addf %0, %11 : vector<80x8xf32>
    %c0_17 = arith.constant 0 : index
    %c2 = arith.constant 2 : index
    %c0_18 = arith.constant 0 : index
    %c0_19 = arith.constant 0 : index
    %c0_20 = arith.constant 0 : index
    %13 = vector.load %arg2[%c0_17, %c2, %c0_18, %c0_19, %c0_20] : memref<1x4x11x10x4xbf16, #tpu.memory_space<vmem>>, vector<1x1x10x8x4xbf16>
    %14 = vector.shape_cast %13 : vector<1x1x10x8x4xbf16> to vector<10x8x4xbf16>
    %c0_21 = arith.constant 0 : index
    %c3 = arith.constant 3 : index
    %c0_22 = arith.constant 0 : index
    %c0_23 = arith.constant 0 : index
    %c0_24 = arith.constant 0 : index
    %15 = vector.load %arg2[%c0_21, %c3, %c0_22, %c0_23, %c0_24] : memref<1x4x11x10x4xbf16, #tpu.memory_space<vmem>>, vector<1x1x10x8x4xbf16>
    %16 = vector.shape_cast %15 : vector<1x1x10x8x4xbf16> to vector<10x8x4xbf16>
    %c0_25 = arith.constant 0 : index
    %c2_26 = arith.constant 2 : index
    %c0_27 = arith.constant 0 : index
    %c1_28 = arith.constant 1 : index
    %c0_29 = arith.constant 0 : index
    %17 = vector.load %arg2[%c0_25, %c2_26, %c0_27, %c1_28, %c0_29] : memref<1x4x11x10x4xbf16, #tpu.memory_space<vmem>>, vector<1x1x10x8x4xbf16>
    %18 = vector.shape_cast %17 : vector<1x1x10x8x4xbf16> to vector<10x8x4xbf16>
    %19 = tpu.concatenate %14, %16, %18 in 2 : vector<10x8x4xbf16>, vector<10x8x4xbf16>, vector<10x8x4xbf16> -> vector<10x8x12xbf16>
    %20 = vector.shape_cast %19 : vector<10x8x12xbf16> to vector<80x12xbf16>
    %c1_30 = arith.constant 1 : index
    %c0_31 = arith.constant 0 : index
    %c0_32 = arith.constant 0 : index
    %21 = vector.load %arg3[%c1_30, %c0_31, %c0_32] : memref<3x12x8xbf16, #tpu.memory_space<vmem>>, vector<1x12x8xbf16>
    %22 = vector.shape_cast %21 : vector<1x12x8xbf16> to vector<12x8xbf16>
    %cst_33 = arith.constant dense<0.000000e+00> : vector<80x8xf32>
    %23 = tpu.matmul %20, %22, %cst_33 {dimension_numbers = #tpu.dot_dimension_numbers<[1], [0], [0], [1], [0, 0, 1, 1], [], []>} : vector<80x12xbf16>, vector<12x8xbf16>, vector<80x8xf32> -> vector<80x8xf32>
    %24 = arith.addf %12, %23 : vector<80x8xf32>
    %c0_34 = arith.constant 0 : index
    %c0_35 = arith.constant 0 : index
    %c1_36 = arith.constant 1 : index
    %c0_37 = arith.constant 0 : index
    %c0_38 = arith.constant 0 : index
    %25 = vector.load %arg2[%c0_34, %c0_35, %c1_36, %c0_37, %c0_38] : memref<1x4x11x10x4xbf16, #tpu.memory_space<vmem>>, vector<1x1x10x8x4xbf16>
    %26 = vector.shape_cast %25 : vector<1x1x10x8x4xbf16> to vector<10x8x4xbf16>
    %c0_39 = arith.constant 0 : index
    %c1_40 = arith.constant 1 : index
    %c1_41 = arith.constant 1 : index
    %c0_42 = arith.constant 0 : index
    %c0_43 = arith.constant 0 : index
    %27 = vector.load %arg2[%c0_39, %c1_40, %c1_41, %c0_42, %c0_43] : memref<1x4x11x10x4xbf16, #tpu.memory_space<vmem>>, vector<1x1x10x8x4xbf16>
    %28 = vector.shape_cast %27 : vector<1x1x10x8x4xbf16> to vector<10x8x4xbf16>
    %c0_44 = arith.constant 0 : index
    %c0_45 = arith.constant 0 : index
    %c1_46 = arith.constant 1 : index
    %c1_47 = arith.constant 1 : index
    %c0_48 = arith.constant 0 : index
    %29 = vector.load %arg2[%c0_44, %c0_45, %c1_46, %c1_47, %c0_48] : memref<1x4x11x10x4xbf16, #tpu.memory_space<vmem>>, vector<1x1x10x8x4xbf16>
    %30 = vector.shape_cast %29 : vector<1x1x10x8x4xbf16> to vector<10x8x4xbf16>
    %31 = tpu.concatenate %26, %28, %30 in 2 : vector<10x8x4xbf16>, vector<10x8x4xbf16>, vector<10x8x4xbf16> -> vector<10x8x12xbf16>
    %32 = vector.shape_cast %31 : vector<10x8x12xbf16> to vector<80x12xbf16>
    %c2_49 = arith.constant 2 : index
    %c0_50 = arith.constant 0 : index
    %c0_51 = arith.constant 0 : index
    %33 = vector.load %arg3[%c2_49, %c0_50, %c0_51] : memref<3x12x8xbf16, #tpu.memory_space<vmem>>, vector<1x12x8xbf16>
    %34 = vector.shape_cast %33 : vector<1x12x8xbf16> to vector<12x8xbf16>
    %cst_52 = arith.constant dense<0.000000e+00> : vector<80x8xf32>
    %35 = tpu.matmul %32, %34, %cst_52 {dimension_numbers = #tpu.dot_dimension_numbers<[1], [0], [0], [1], [0, 0, 1, 1], [], []>} : vector<80x12xbf16>, vector<12x8xbf16>, vector<80x8xf32> -> vector<80x8xf32>
    %36 = arith.addf %24, %35 : vector<80x8xf32>
    %c0_53 = arith.constant 0 : index
    %c0_54 = arith.constant 0 : index
    %37 = vector.load %arg4[%c0_53, %c0_54] : memref<1x8xf32, #tpu.memory_space<vmem>>, vector<1x8xf32>
    %38 = vector.broadcast %37 : vector<1x8xf32> to vector<80x8xf32>
    %39 = arith.addf %36, %38 : vector<80x8xf32>
    %cst_55 = arith.constant 0.000000e+00 : f32
    %40 = vector.broadcast %cst_55 : f32 to vector<80x8xf32>
    %41 = arith.maximumf %39, %40 : vector<80x8xf32>
    %42 = vector.shape_cast %41 : vector<80x8xf32> to vector<10x8x8xf32>
    %43 = arith.truncf %42 : vector<10x8x8xf32> to vector<10x8x8xbf16>
    %c0_56 = arith.constant 0 : index
    %c1_57 = arith.constant 1 : index
    %c0_58 = arith.constant 0 : index
    %44 = vector.load %arg8[%c0_56, %c1_57, %c0_58] : memref<10x10x8xbf16, #tpu.memory_space<vmem>>, vector<10x8x8xbf16>
    tpu.vector_store %arg8[%c0_56, %c1_57, %c0_58], %43 {strides = array<i32>} : memref<10x10x8xbf16, #tpu.memory_space<vmem>>, vector<10x8x8xbf16>,
    %cst_59 = arith.constant 0.000000e+00 : bf16
    %45 = vector.broadcast %cst_59 : bf16 to vector<10x1x8xbf16>
    %c0_60 = arith.constant 0 : index
    %c0_61 = arith.constant 0 : index
    %c0_62 = arith.constant 0 : index
    %46 = vector.load %arg8[%c0_60, %c0_61, %c0_62] : memref<10x10x8xbf16, #tpu.memory_space<vmem>>, vector<10x1x8xbf16>
    tpu.vector_store %arg8[%c0_60, %c0_61, %c0_62], %45 {strides = array<i32>} : memref<10x10x8xbf16, #tpu.memory_space<vmem>>, vector<10x1x8xbf16>,
    %cst_63 = arith.constant 0.000000e+00 : bf16
    %47 = vector.broadcast %cst_63 : bf16 to vector<10x1x8xbf16>
    %c0_64 = arith.constant 0 : index
    %c9 = arith.constant 9 : index
    %c0_65 = arith.constant 0 : index
    %48 = vector.load %arg8[%c0_64, %c9, %c0_65] : memref<10x10x8xbf16, #tpu.memory_space<vmem>>, vector<10x1x8xbf16>
    tpu.vector_store %arg8[%c0_64, %c9, %c0_65], %47 {strides = array<i32>} : memref<10x10x8xbf16, #tpu.memory_space<vmem>>, vector<10x1x8xbf16>,
    %c0_i32 = arith.constant 0 : i32
    %49 = arith.cmpi eq, %arg1, %c0_i32 : i32
    %50 = arith.extui %49 : i1 to i32
    %c0_i32_66 = arith.constant 0 : i32
    %51 = arith.cmpi ne, %50, %c0_i32_66 : i32
    scf.if %51 {
      %cst_116 = arith.constant 0.000000e+00 : bf16
      %92 = vector.broadcast %cst_116 : bf16 to vector<1x10x8xbf16>
      %c0_117 = arith.constant 0 : index
      %c0_118 = arith.constant 0 : index
      %c0_119 = arith.constant 0 : index
      %93 = vector.load %arg8[%c0_117, %c0_118, %c0_119] : memref<10x10x8xbf16, #tpu.memory_space<vmem>>, vector<1x10x8xbf16>
      tpu.vector_store %arg8[%c0_117, %c0_118, %c0_119], %92 {strides = array<i32>} : memref<10x10x8xbf16, #tpu.memory_space<vmem>>, vector<1x10x8xbf16>,
    } else {
    }
    %c0_i32_67 = arith.constant 0 : i32
    %52 = arith.cmpi eq, %arg1, %c0_i32_67 : i32
    %53 = arith.extui %52 : i1 to i32
    %c0_i32_68 = arith.constant 0 : i32
    %54 = arith.cmpi ne, %53, %c0_i32_68 : i32
    scf.if %54 {
      %cst_116 = arith.constant 0.000000e+00 : bf16
      %92 = vector.broadcast %cst_116 : bf16 to vector<1x10x8xbf16>
      %c9_117 = arith.constant 9 : index
      %c0_118 = arith.constant 0 : index
      %c0_119 = arith.constant 0 : index
      %93 = vector.load %arg8[%c9_117, %c0_118, %c0_119] : memref<10x10x8xbf16, #tpu.memory_space<vmem>>, vector<1x10x8xbf16>
      tpu.vector_store %arg8[%c9_117, %c0_118, %c0_119], %92 {strides = array<i32>} : memref<10x10x8xbf16, #tpu.memory_space<vmem>>, vector<1x10x8xbf16>,
    } else {
    }
    %cst_69 = arith.constant 0.000000e+00 : f32
    %55 = vector.broadcast %cst_69 : f32 to vector<64x16xf32>
    %c0_70 = arith.constant 0 : index
    %c0_71 = arith.constant 0 : index
    %c0_72 = arith.constant 0 : index
    %56 = vector.load %arg8[%c0_70, %c0_71, %c0_72] : memref<10x10x8xbf16, #tpu.memory_space<vmem>>, vector<8x8x8xbf16>
    %c0_73 = arith.constant 0 : index
    %c1_74 = arith.constant 1 : index
    %c0_75 = arith.constant 0 : index
    %57 = vector.load %arg8[%c0_73, %c1_74, %c0_75] : memref<10x10x8xbf16, #tpu.memory_space<vmem>>, vector<8x8x8xbf16>
    %c0_76 = arith.constant 0 : index
    %c2_77 = arith.constant 2 : index
    %c0_78 = arith.constant 0 : index
    %58 = vector.load %arg8[%c0_76, %c2_77, %c0_78] : memref<10x10x8xbf16, #tpu.memory_space<vmem>>, vector<8x8x8xbf16>
    %59 = tpu.concatenate %56, %57, %58 in 2 : vector<8x8x8xbf16>, vector<8x8x8xbf16>, vector<8x8x8xbf16> -> vector<8x8x24xbf16>
    %60 = vector.shape_cast %59 : vector<8x8x24xbf16> to vector<64x24xbf16>
    %c0_79 = arith.constant 0 : index
    %c0_80 = arith.constant 0 : index
    %c0_81 = arith.constant 0 : index
    %61 = vector.load %arg5[%c0_79, %c0_80, %c0_81] : memref<3x24x16xbf16, #tpu.memory_space<vmem>>, vector<1x24x16xbf16>
    %62 = vector.shape_cast %61 : vector<1x24x16xbf16> to vector<24x16xbf16>
    %cst_82 = arith.constant dense<0.000000e+00> : vector<64x16xf32>
    %63 = tpu.matmul %60, %62, %cst_82 {dimension_numbers = #tpu.dot_dimension_numbers<[1], [0], [0], [1], [0, 0, 1, 1], [], []>} : vector<64x24xbf16>, vector<24x16xbf16>, vector<64x16xf32> -> vector<64x16xf32>
    %64 = arith.addf %55, %63 : vector<64x16xf32>
    %c1_83 = arith.constant 1 : index
    %c0_84 = arith.constant 0 : index
    %c0_85 = arith.constant 0 : index
    %65 = vector.load %arg8[%c1_83, %c0_84, %c0_85] : memref<10x10x8xbf16, #tpu.memory_space<vmem>>, vector<8x8x8xbf16>
    %c1_86 = arith.constant 1 : index
    %c1_87 = arith.constant 1 : index
    %c0_88 = arith.constant 0 : index
    %66 = vector.load %arg8[%c1_86, %c1_87, %c0_88] : memref<10x10x8xbf16, #tpu.memory_space<vmem>>, vector<8x8x8xbf16>
    %c1_89 = arith.constant 1 : index
    %c2_90 = arith.constant 2 : index
    %c0_91 = arith.constant 0 : index
    %67 = vector.load %arg8[%c1_89, %c2_90, %c0_91] : memref<10x10x8xbf16, #tpu.memory_space<vmem>>, vector<8x8x8xbf16>
    %68 = tpu.concatenate %65, %66, %67 in 2 : vector<8x8x8xbf16>, vector<8x8x8xbf16>, vector<8x8x8xbf16> -> vector<8x8x24xbf16>
    %69 = vector.shape_cast %68 : vector<8x8x24xbf16> to vector<64x24xbf16>
    %c1_92 = arith.constant 1 : index
    %c0_93 = arith.constant 0 : index
    %c0_94 = arith.constant 0 : index
    %70 = vector.load %arg5[%c1_92, %c0_93, %c0_94] : memref<3x24x16xbf16, #tpu.memory_space<vmem>>, vector<1x24x16xbf16>
    %71 = vector.shape_cast %70 : vector<1x24x16xbf16> to vector<24x16xbf16>
    %cst_95 = arith.constant dense<0.000000e+00> : vector<64x16xf32>
    %72 = tpu.matmul %69, %71, %cst_95 {dimension_numbers = #tpu.dot_dimension_numbers<[1], [0], [0], [1], [0, 0, 1, 1], [], []>} : vector<64x24xbf16>, vector<24x16xbf16>, vector<64x16xf32> -> vector<64x16xf32>
    %73 = arith.addf %64, %72 : vector<64x16xf32>
    %c2_96 = arith.constant 2 : index
    %c0_97 = arith.constant 0 : index
    %c0_98 = arith.constant 0 : index
    %74 = vector.load %arg8[%c2_96, %c0_97, %c0_98] : memref<10x10x8xbf16, #tpu.memory_space<vmem>>, vector<8x8x8xbf16>
    %c2_99 = arith.constant 2 : index
    %c1_100 = arith.constant 1 : index
    %c0_101 = arith.constant 0 : index
    %75 = vector.load %arg8[%c2_99, %c1_100, %c0_101] : memref<10x10x8xbf16, #tpu.memory_space<vmem>>, vector<8x8x8xbf16>
    %c2_102 = arith.constant 2 : index
    %c2_103 = arith.constant 2 : index
    %c0_104 = arith.constant 0 : index
    %76 = vector.load %arg8[%c2_102, %c2_103, %c0_104] : memref<10x10x8xbf16, #tpu.memory_space<vmem>>, vector<8x8x8xbf16>
    %77 = tpu.concatenate %74, %75, %76 in 2 : vector<8x8x8xbf16>, vector<8x8x8xbf16>, vector<8x8x8xbf16> -> vector<8x8x24xbf16>
    %78 = vector.shape_cast %77 : vector<8x8x24xbf16> to vector<64x24xbf16>
    %c2_105 = arith.constant 2 : index
    %c0_106 = arith.constant 0 : index
    %c0_107 = arith.constant 0 : index
    %79 = vector.load %arg5[%c2_105, %c0_106, %c0_107] : memref<3x24x16xbf16, #tpu.memory_space<vmem>>, vector<1x24x16xbf16>
    %80 = vector.shape_cast %79 : vector<1x24x16xbf16> to vector<24x16xbf16>
    %cst_108 = arith.constant dense<0.000000e+00> : vector<64x16xf32>
    %81 = tpu.matmul %78, %80, %cst_108 {dimension_numbers = #tpu.dot_dimension_numbers<[1], [0], [0], [1], [0, 0, 1, 1], [], []>} : vector<64x24xbf16>, vector<24x16xbf16>, vector<64x16xf32> -> vector<64x16xf32>
    %82 = arith.addf %73, %81 : vector<64x16xf32>
    %c0_109 = arith.constant 0 : index
    %c0_110 = arith.constant 0 : index
    %83 = vector.load %arg6[%c0_109, %c0_110] : memref<1x16xf32, #tpu.memory_space<vmem>>, vector<1x16xf32>
    %84 = vector.broadcast %83 : vector<1x16xf32> to vector<64x16xf32>
    %85 = arith.addf %82, %84 : vector<64x16xf32>
    %cst_111 = arith.constant 0.000000e+00 : f32
    %86 = vector.broadcast %cst_111 : f32 to vector<64x16xf32>
    %87 = arith.maximumf %85, %86 : vector<64x16xf32>
    %88 = vector.shape_cast %87 : vector<64x16xf32> to vector<8x8x16xf32>
    %c0_112 = arith.constant 0 : index
    %c0_113 = arith.constant 0 : index
    %c0_114 = arith.constant 0 : index
    %c0_115 = arith.constant 0 : index
    %89 = vector.load %arg7[%c0_112, %c0_113, %c0_114, %c0_115] : memref<1x8x8x16xf32, #tpu.memory_space<vmem>>, vector<1x8x8x16xf32>
    %90 = vector.shape_cast %89 : vector<1x8x8x16xf32> to vector<8x8x16xf32>
    %91 = vector.shape_cast %88 : vector<8x8x16xf32> to vector<1x8x8x16xf32>
    tpu.vector_store %arg7[%c0_112, %c0_113, %c0_114, %c0_115], %91 {strides = array<i32>} : memref<1x8x8x16xf32, #tpu.memory_space<vmem>>, vector<1x8x8x16xf32>,
    return
  }
  func.func @transform_0(%arg0: i32, %arg1: i32) -> (i32, i32, i32, i32, i32) {
    %c1_i32 = arith.constant 1 : i32
    %0 = arith.muli %arg0, %c1_i32 : i32
    %1 = arith.addi %0, %arg1 : i32
    %c0_i32 = arith.constant 0 : i32
    %c0_i32_0 = arith.constant 0 : i32
    %c0_i32_1 = arith.constant 0 : i32
    %c0_i32_2 = arith.constant 0 : i32
    %c0_i32_3 = arith.constant 0 : i32
    return %1, %c0_i32, %c0_i32_0, %c0_i32_1, %c0_i32_2 : i32, i32, i32, i32, i32
  }
  func.func @transform_1(%arg0: i32, %arg1: i32) -> (i32, i32, i32) {
    %c0_i32 = arith.constant 0 : i32
    %c0_i32_0 = arith.constant 0 : i32
    %c0_i32_1 = arith.constant 0 : i32
    %c0_i32_2 = arith.constant 0 : i32
    return %c0_i32, %c0_i32_0, %c0_i32_1 : i32, i32, i32
  }
  func.func @transform_2(%arg0: i32, %arg1: i32) -> (i32, i32) {
    %c0_i32 = arith.constant 0 : i32
    %c0_i32_0 = arith.constant 0 : i32
    %c0_i32_1 = arith.constant 0 : i32
    return %c0_i32, %c0_i32_0 : i32, i32
  }
  func.func @transform_3(%arg0: i32, %arg1: i32) -> (i32, i32, i32) {
    %c0_i32 = arith.constant 0 : i32
    %c0_i32_0 = arith.constant 0 : i32
    %c0_i32_1 = arith.constant 0 : i32
    %c0_i32_2 = arith.constant 0 : i32
    return %c0_i32, %c0_i32_0, %c0_i32_1 : i32, i32, i32
  }
  func.func @transform_4(%arg0: i32, %arg1: i32) -> (i32, i32) {
    %c0_i32 = arith.constant 0 : i32
    %c0_i32_0 = arith.constant 0 : i32
    %c0_i32_1 = arith.constant 0 : i32
    return %c0_i32, %c0_i32_0 : i32, i32
  }
  func.func @transform_5(%arg0: i32, %arg1: i32) -> (i32, i32, i32, i32) {
    %c0_i32 = arith.constant 0 : i32
    %c0_i32_0 = arith.constant 0 : i32
    %c0_i32_1 = arith.constant 0 : i32
    return %arg0, %arg1, %c0_i32, %c0_i32_0 : i32, i32, i32, i32
  }
}

</mosaic_0001>

<llo_original>
// kernel: double_conv_block.1
$region0: #{double_conv_block.1}
  #allocation0 [shape = 'u32[]', space=smem, size = 0x4, offset = 0x4, fixed_abs, tag = 'smem constant byte address 0x4 - core index']
  #allocation1 [shape = 'u32[144,128]{1,0:T(1,128)}', space=vmem, size = 0x12000, scoped, tag = 'internal scratch']
  #allocation2 [shape = 'bf16[10,10,8]{2,1,0:T(8,128)(2,1)}', space=vmem, size = 0xa000, scoped, tag = 'scratch operand']
  %s0 = inlined_call_operand.vmem [shape: bf16[2,4,11,10,4], index: 0, kind: input, shape index: {}]
  %s1 = inlined_call_operand.vmem [shape: bf16[3,12,8], index: 1, kind: input, shape index: {}]
  %s2 = inlined_call_operand.vmem [shape: f32[1,8], index: 2, kind: input, shape index: {}]
  %s3 = inlined_call_operand.vmem [shape: bf16[3,24,16], index: 3, kind: input, shape index: {}]
  %s4 = inlined_call_operand.vmem [shape: f32[1,16], index: 4, kind: input, shape index: {}]
  %s5 = inlined_call_operand.hbm [shape: f32[2,8,8,16], index: 5, kind: output, shape index: {}]
  %s6 = sld [smem:[#allocation0]]
  $region57: #{double_conv_block.1} parent=0
    _
  %s8 = ssub.s32 1, %s6
  %s9 = scalar_select 0, %s8, %s6
  $region1: #{double_conv_block.1} parent=0
    #allocation3 [shape = 'u8[65536]{0}', space=vmem, size = 0x10000, scoped, tag = 'output window, operand 0']
    #allocation4 [shape = 's32[2]{0}', space=sflag, size = 0x8, scoped, tag = 'scoped memory for double_conv_block.1']
    %10 = vsyncpa [#allocation4], 0
    %s11 = scalar_lea.sflag [#allocation4], 1
    %12 = vsyncpa %s11, 0
    loop: start=0, step=1, limit=4
    $region2: #{double_conv_block.1} parent=1 // loop_pre_header
      _
    $region3: #{double_conv_block.1} parent=1 // loop_header
      %s14 = sphi 0, %s18
      %p15 = scmp.ge.s32.totalorder %s14, 4
      %s21 = sphi 0, %s33
      %s22 = sphi 0, %s29
      %s23 = sphi 0, %s21
      %s24 = sphi 0, %s22
      %s25 = sphi 0, %s23
      %s26 = sphi 0, %s24
      %s38 = sphi 0, %s40
      %s41 = sphi 0, %s38
      %s42 = sphi 0, %s41
      %s58 = sphi 0, %s42
      %s62 = sphi 0, %s62
      %s64 = sphi 0, %s62
      %s65 = sphi 0, %s64
      %s79 = sphi 0, %s65
      %s83 = sphi 0, %s83
      %s85 = sphi 0, %s83
      %s86 = sphi 0, %s85
      %s100 = sphi 0, %s86
      %s104 = sphi 0, %s104
      %s106 = sphi 0, %s104
      %s107 = sphi 0, %s106
      %s121 = sphi 0, %s107
      %s125 = sphi 0, %s125
      %s127 = sphi 0, %s125
      %s128 = sphi 0, %s127
      %s142 = sphi 0, %s128
      %s150 = sphi 0, %s152
      %s153 = sphi 0, %s150
      %s154 = sphi 0, %s153
      %s170 = sphi 0, %s154
    $region4: #{double_conv_block.1} parent=1 // loop_header_branch
      %17 = sbr.rel (%p15) target = $region8
    $region5: #{double_conv_block.1} parent=1 // loop_body
      %s19 = ssub.s32 %s14, 1
      %s20 = ssub.s32 %s14, 2
      %s27 = sadd.s32 1, %s22
      %p28 = scmp.ge.s32.totalorder %s27, 1
      %s29 = scalar_select %p28, 0, %s27
      %s30 = sadd.s32 1, %s21
      %s31 = scalar_select %p28, %s30, %s21
      %p32 = scmp.ge.s32.totalorder %s31, 2
      %s33 = scalar_select %p32, 0, %s31
      %s34 = sadd.s32 %s21, %s22
      %s35 = sadd.s32 %s33, %s29
      %s36 = ssub.s32 %s34, %s35
      %p37 = scmp.eq.s32.totalorder %s36, 0
      %s39 = sadd.s32 %s38, 1
      %s40 = scalar_select %p37, %s38, %s39
      %p43 = pneg %p37
      %p44 = scmp.eq.s32.totalorder %s14, 1
      %p45 = por %p43, %p44
      %p46 = scmp.ne.s32.totalorder %s38, %s41
      %p47 = scmp.eq.s32.totalorder %s14, 0
      %p48 = por %p46, %p47
      %p49 = scmp.ne.s32.totalorder %s38, %s41
      %p50 = scmp.eq.s32.totalorder %s19, 1
      %p51 = por %p49, %p50
      %p52 = scmp.ne.s32.totalorder %s41, %s42
      %p53 = scmp.eq.s32.totalorder %s19, 0
      %p54 = por %p52, %p53
      %p55 = scmp.ne.s32.totalorder %s41, %s42
      %p56 = scmp.eq.s32.totalorder %s20, 1
      %p57 = por %p55, %p56
      %p59 = scmp.ne.s32.totalorder %s42, %s58
      %p60 = scmp.eq.s32.totalorder %s20, 0
      %p61 = por %p59, %p60
      %s63 = sadd.s32 %s62, 1
      %p66 = scmp.eq.s32.totalorder %s14, 1
      %p67 = scmp.ne.s32.totalorder %s62, %s64
      %p68 = scmp.eq.s32.totalorder %s14, 0
      %p69 = por %p67, %p68
      %p70 = scmp.ne.s32.totalorder %s62, %s64
      %p71 = scmp.eq.s32.totalorder %s19, 1
      %p72 = por %p70, %p71
      %p73 = scmp.ne.s32.totalorder %s64, %s65
      %p74 = scmp.eq.s32.totalorder %s19, 0
      %p75 = por %p73, %p74
      %p76 = scmp.ne.s32.totalorder %s64, %s65
      %p77 = scmp.eq.s32.totalorder %s20, 1
      %p78 = por %p76, %p77
      %p80 = scmp.ne.s32.totalorder %s65, %s79
      %p81 = scmp.eq.s32.totalorder %s20, 0
      %p82 = por %p80, %p81
      %s84 = sadd.s32 %s83, 1
      %p87 = scmp.eq.s32.totalorder %s14, 1
      %p88 = scmp.ne.s32.totalorder %s83, %s85
      %p89 = scmp.eq.s32.totalorder %s14, 0
      %p90 = por %p88, %p89
      %p91 = scmp.ne.s32.totalorder %s83, %s85
      %p92 = scmp.eq.s32.totalorder %s19, 1
      %p93 = por %p91, %p92
      %p94 = scmp.ne.s32.totalorder %s85, %s86
      %p95 = scmp.eq.s32.totalorder %s19, 0
      %p96 = por %p94, %p95
      %p97 = scmp.ne.s32.totalorder %s85, %s86
      %p98 = scmp.eq.s32.totalorder %s20, 1
      %p99 = por %p97, %p98
      %p101 = scmp.ne.s32.totalorder %s86, %s100
      %p102 = scmp.eq.s32.totalorder %s20, 0
      %p103 = por %p101, %p102
      %s105 = sadd.s32 %s104, 1
      %p108 = scmp.eq.s32.totalorder %s14, 1
      %p109 = scmp.ne.s32.totalorder %s104, %s106
      %p110 = scmp.eq.s32.totalorder %s14, 0
      %p111 = por %p109, %p110
      %p112 = scmp.ne.s32.totalorder %s104, %s106
      %p113 = scmp.eq.s32.totalorder %s19, 1
      %p114 = por %p112, %p113
      %p115 = scmp.ne.s32.totalorder %s106, %s107
      %p116 = scmp.eq.s32.totalorder %s19, 0
      %p117 = por %p115, %p116
      %p118 = scmp.ne.s32.totalorder %s106, %s107
      %p119 = scmp.eq.s32.totalorder %s20, 1
      %p120 = por %p118, %p119
      %p122 = scmp.ne.s32.totalorder %s107, %s121
      %p123 = scmp.eq.s32.totalorder %s20, 0
      %p124 = por %p122, %p123
      %s126 = sadd.s32 %s125, 1
      %p129 = scmp.eq.s32.totalorder %s14, 1
      %p130 = scmp.ne.s32.totalorder %s125, %s127
      %p131 = scmp.eq.s32.totalorder %s14, 0
      %p132 = por %p130, %p131
      %p133 = scmp.ne.s32.totalorder %s125, %s127
      %p134 = scmp.eq.s32.totalorder %s19, 1
      %p135 = por %p133, %p134
      %p136 = scmp.ne.s32.totalorder %s127, %s128
      %p137 = scmp.eq.s32.totalorder %s19, 0
      %p138 = por %p136, %p137
      %p139 = scmp.ne.s32.totalorder %s127, %s128
      %p140 = scmp.eq.s32.totalorder %s20, 1
      %p141 = por %p139, %p140
      %p143 = scmp.ne.s32.totalorder %s128, %s142
      %p144 = scmp.eq.s32.totalorder %s20, 0
      %p145 = por %p143, %p144
      %s146 = ssub.s32 %s21, %s33
      %s147 = ssub.s32 %s22, %s29
      %s148 = sor.u32 %s146, %s147
      %p149 = scmp.eq.s32.totalorder %s148, 0
      %s151 = sadd.s32 %s150, 1
      %s152 = scalar_select %p149, %s150, %s151
      %p155 = pneg %p149
      %p156 = scmp.eq.s32.totalorder %s14, 1
      %p157 = por %p155, %p156
      %p158 = scmp.ne.s32.totalorder %s150, %s153
      %p159 = scmp.eq.s32.totalorder %s14, 0
      %p160 = por %p158, %p159
      %p161 = scmp.ne.s32.totalorder %s150, %s153
      %p162 = scmp.eq.s32.totalorder %s19, 1
      %p163 = por %p161, %p162
      %p164 = scmp.ne.s32.totalorder %s153, %s154
      %p165 = scmp.eq.s32.totalorder %s19, 0
      %p166 = por %p164, %p165
      %p167 = scmp.ne.s32.totalorder %s153, %s154
      %p168 = scmp.eq.s32.totalorder %s20, 1
      %p169 = por %p167, %p168
      %p171 = scmp.ne.s32.totalorder %s154, %s170
      %p172 = scmp.eq.s32.totalorder %s20, 0
      %p173 = por %p171, %p172
      %p174 = scmp.le.s32.totalorder 1, %s14
      %p175 = scmp.lt.s32.totalorder %s14, 3
      %p176 = pnand %p174, %p175
      %p177 = pneg %p176
      // Predicated region
      $region9: #{double_conv_block.1} parent=5 // pred_check
        _
      $region10: #{double_conv_block.1} parent=5 // pred_check_branch
        %179 = sbr.rel (%p176) target = $region12
      $region11: #{double_conv_block.1} parent=5 // pred_region
        %s180 = ssub.s32 %s14, 1
        // Predicated region
        $region13: #{double_conv_block.1} parent=11 // pred_check
          %p181 = pneg %p75
        $region14: #{double_conv_block.1} parent=11 // pred_check_branch
          %183 = sbr.rel (%p181) target = $region16
        $region15: #{double_conv_block.1} parent=11 // pred_region
          _
        $region16: #{double_conv_block.1} parent=11 // pred_fallthru
          _
        // Predicated region
        $region17: #{double_conv_block.1} parent=11 // pred_check
          %p184 = pneg %p96
        $region18: #{double_conv_block.1} parent=11 // pred_check_branch
          %186 = sbr.rel (%p184) target = $region20
        $region19: #{double_conv_block.1} parent=11 // pred_region
          _
        $region20: #{double_conv_block.1} parent=11 // pred_fallthru
          _
        // Predicated region
        $region21: #{double_conv_block.1} parent=11 // pred_check
          %p187 = pneg %p117
        $region22: #{double_conv_block.1} parent=11 // pred_check_branch
          %189 = sbr.rel (%p187) target = $region24
        $region23: #{double_conv_block.1} parent=11 // pred_region
          _
        $region24: #{double_conv_block.1} parent=11 // pred_fallthru
          _
        // Predicated region
        $region25: #{double_conv_block.1} parent=11 // pred_check
          %p190 = pneg %p138
        $region26: #{double_conv_block.1} parent=11 // pred_check_branch
          %192 = sbr.rel (%p190) target = $region28
        $region27: #{double_conv_block.1} parent=11 // pred_region
          _
        $region28: #{double_conv_block.1} parent=11 // pred_fallthru
          _
      $region12: #{double_conv_block.1} parent=5 // pred_fallthru
        _
      %p193 = scmp.lt.s32.totalorder %s14, 2
      // Predicated region
      $region29: #{double_conv_block.1} parent=5 // pred_check
        %p194 = pneg %p193
      $region30: #{double_conv_block.1} parent=5 // pred_check_branch
        %196 = sbr.rel (%p194) target = $region32
      $region31: #{double_conv_block.1} parent=5 // pred_region
        // Predicated region
        $region33: #{double_conv_block.1} parent=31 // pred_check
          %p197 = pneg %p48
        $region34: #{double_conv_block.1} parent=31 // pred_check_branch
          %199 = sbr.rel (%p197) target = $region36
        $region35: #{double_conv_block.1} parent=31 // pred_region
          %s200 = sadd.s32 %s21, %s22
          %p201 = scmp.lt.s32.totalorder %s200, 1
          %s202 = scalar_select %p201, %s200, 1
          %s203 = smul.addr %s202, 88
          %s204 = smul.addr %s203, 4
          %s205 = scalar_lea.vmem %s0, %s204
          %s206 = sadd.s32 %s21, %s22
        $region36: #{double_conv_block.1} parent=31 // pred_fallthru
          _
      $region32: #{double_conv_block.1} parent=5 // pred_fallthru
        _
      %p207 = scmp.le.s32.totalorder 1, %s14
      %p208 = scmp.lt.s32.totalorder %s14, 3
      %p209 = pnand %p207, %p208
      %p210 = pneg %p209
      // Predicated region
      $region37: #{double_conv_block.1} parent=5 // pred_check
        _
      $region38: #{double_conv_block.1} parent=5 // pred_check_branch
        %212 = sbr.rel (%p209) target = $region40
      $region39: #{double_conv_block.1} parent=5 // pred_region
        %s213 = ssub.s32 %s14, 1
        %s214 = sadd.s32 %s23, %s24
        %p215 = scmp.lt.s32.totalorder %s214, 1
        %s216 = scalar_select %p215, %s214, 1
        %s217 = smul.addr %s216, 88
        %s218 = smul.addr %s217, 4
        %s219 = scalar_lea.vmem %s0, %s218
        %p220 = pneg %p54
        %p221 = pneg %p51
        %p222 = pneg %p75
        %p223 = pneg %p72
        %p224 = pneg %p96
        %p225 = pneg %p93
        %p226 = pneg %p117
        %p227 = pneg %p114
        %p228 = pneg %p138
        %p229 = pneg %p135
        %p230 = pneg %p166
        %p231 = pneg %p163
        %s232 = sand.u32 %s153, 1
        %s233 = scalar_lea.sflag [#allocation4], %s232
        %s234 = sand.u32 %s153, 1
        %s235 = smul.addr %s234, 64
        %s236 = scalar_lea.vmem [#allocation3], %s235
        %s237 = sadd.s32 %s23, %s24
        %p238 = scmp.lt.s32.totalorder %s237, 1
        %s239 = scalar_select %p238, %s237, 1
        %s240 = smul.addr %s239, 88
        %s241 = smul.addr %s240, 4
        %s242 = scalar_lea.vmem %s0, %s241
        %s243 = sadd.s32 %s23, %s24
        %s244 = smul.u32 8, %s24
        %v246 = vld [vmem:[%s242] sm:$0xf]
        %v247 = vld [vmem:[%s242 + $0x8] sm:$0xf]
        %v248 = vld [vmem:[%s242 + $0x10] sm:$0xf]
        %v249 = vld [vmem:[%s242 + $0x18] sm:$0xf]
        %v250 = vld [vmem:[%s242 + $0x20] sm:$0xf]
        %v251 = vld [vmem:[%s242 + $0x28] sm:$0xf]
        %v252 = vld [vmem:[%s242 + $0x30] sm:$0xf]
        %v253 = vld [vmem:[%s242 + $0x38] sm:$0xf]
        %v254 = vld [vmem:[%s242 + $0x40] sm:$0xf]
        %v255 = vld [vmem:[%s242 + $0x48] sm:$0xf]
        %s256 = scalar_lea.vmem %s242, 88
        %v257 = vld [vmem:[%s256] sm:$0xf]
        %v258 = vld [vmem:[%s256 + $0x8] sm:$0xf]
        %v259 = vld [vmem:[%s256 + $0x10] sm:$0xf]
        %v260 = vld [vmem:[%s256 + $0x18] sm:$0xf]
        %v261 = vld [vmem:[%s256 + $0x20] sm:$0xf]
        %v262 = vld [vmem:[%s256 + $0x28] sm:$0xf]
        %v263 = vld [vmem:[%s256 + $0x30] sm:$0xf]
        %v264 = vld [vmem:[%s256 + $0x38] sm:$0xf]
        %v265 = vld [vmem:[%s256 + $0x40] sm:$0xf]
        %v266 = vld [vmem:[%s256 + $0x48] sm:$0xf]
        %v267 = vld [vmem:[%s242 + $0x4] sm:$0x1]
        %v268 = vld [vmem:[%s242 + $0xc] sm:$0x1]
        %v269 = vld [vmem:[%s242 + $0x14] sm:$0x1]
        %v270 = vld [vmem:[%s242 + $0x1c] sm:$0x1]
        %v271 = vld [vmem:[%s242 + $0x24] sm:$0x1]
        %v272 = vld [vmem:[%s242 + $0x2c] sm:$0x1]
        %v273 = vld [vmem:[%s242 + $0x34] sm:$0x1]
        %v274 = vld [vmem:[%s242 + $0x3c] sm:$0x1]
        %v275 = vld [vmem:[%s242 + $0x44] sm:$0x1]
        %v276 = vld [vmem:[%s242 + $0x4c] sm:$0x1]
        %v287 = vunpack.c.l.b16 %v257
        %v288 = vunpack.c.l.b16 %v258
        %v289 = vunpack.c.l.b16 %v259
        %v290 = vunpack.c.l.b16 %v260
        %v291 = vunpack.c.l.b16 %v261
        %v292 = vunpack.c.l.b16 %v262
        %v293 = vunpack.c.l.b16 %v263
        %v294 = vunpack.c.l.b16 %v264
        %v295 = vunpack.c.l.b16 %v265
        %v296 = vunpack.c.l.b16 %v266
        %v297 = vpack.c.b16 %v287, %v287
        %v298 = vpack.c.b16 %v288, %v288
        %v299 = vpack.c.b16 %v289, %v289
        %v300 = vpack.c.b16 %v290, %v290
        %v301 = vpack.c.b16 %v291, %v291
        %v302 = vpack.c.b16 %v292, %v292
        %v303 = vpack.c.b16 %v293, %v293
        %v304 = vpack.c.b16 %v294, %v294
        %v305 = vpack.c.b16 %v295, %v295
        %v306 = vpack.c.b16 %v296, %v296
        %307 = vrot.lane.b32.xlu0 %v297, 4
        %v308 = vpop.permute.xlu0 %307
        %309 = vrot.lane.b32.xlu0 %v298, 4
        %v310 = vpop.permute.xlu0 %309
        %311 = vrot.lane.b32.xlu0 %v299, 4
        %v312 = vpop.permute.xlu0 %311
        %313 = vrot.lane.b32.xlu0 %v300, 4
        %v314 = vpop.permute.xlu0 %313
        %315 = vrot.lane.b32.xlu0 %v301, 4
        %v316 = vpop.permute.xlu0 %315
        %317 = vrot.lane.b32.xlu0 %v302, 4
        %v318 = vpop.permute.xlu0 %317
        %319 = vrot.lane.b32.xlu0 %v303, 4
        %v320 = vpop.permute.xlu0 %319
        %321 = vrot.lane.b32.xlu0 %v304, 4
        %v322 = vpop.permute.xlu0 %321
        %323 = vrot.lane.b32.xlu0 %v305, 4
        %v324 = vpop.permute.xlu0 %323
        %325 = vrot.lane.b32.xlu0 %v306, 4
        %v326 = vpop.permute.xlu0 %325
        %v347 = vunpack.c.l.b16 %v246
        %v348 = vunpack.c.l.b16 %v267
        %v349 = vunpack.c.l.b16 %v247
        %v350 = vunpack.c.l.b16 %v268
        %v351 = vunpack.c.l.b16 %v248
        %v352 = vunpack.c.l.b16 %v269
        %v353 = vunpack.c.l.b16 %v249
        %v354 = vunpack.c.l.b16 %v270
        %v355 = vunpack.c.l.b16 %v250
        %v356 = vunpack.c.l.b16 %v271
        %v357 = vunpack.c.l.b16 %v251
        %v358 = vunpack.c.l.b16 %v272
        %v359 = vunpack.c.l.b16 %v252
        %v360 = vunpack.c.l.b16 %v273
        %v361 = vunpack.c.l.b16 %v253
        %v362 = vunpack.c.l.b16 %v274
        %v363 = vunpack.c.l.b16 %v254
        %v364 = vunpack.c.l.b16 %v275
        %v365 = vunpack.c.l.b16 %v255
        %v366 = vunpack.c.l.b16 %v276
        %v367 = vpack.c.b16 %v348, %v347
        %v368 = vpack.c.b16 %v350, %v349
        %v369 = vpack.c.b16 %v352, %v351
        %v370 = vpack.c.b16 %v354, %v353
        %v371 = vpack.c.b16 %v356, %v355
        %v372 = vpack.c.b16 %v358, %v357
        %v373 = vpack.c.b16 %v360, %v359
        %v374 = vpack.c.b16 %v362, %v361
        %v375 = vpack.c.b16 %v364, %v363
        %v376 = vpack.c.b16 %v366, %v365
        %v378 = vshrl.u32 %v367, 16
        %v380 = vshll.u32 %v367, 16
        %v382 = vrot.slane %v380, 1
        %v383 = vor.u32 %v378, %v382
        %v385 = vshrl.u32 %v368, 16
        %v387 = vshll.u32 %v368, 16
        %v389 = vrot.slane %v387, 1
        %v390 = vor.u32 %v385, %v389
        %v392 = vshrl.u32 %v369, 16
        %v394 = vshll.u32 %v369, 16
        %v396 = vrot.slane %v394, 1
        %v397 = vor.u32 %v392, %v396
        %v399 = vshrl.u32 %v370, 16
        %v401 = vshll.u32 %v370, 16
        %v403 = vrot.slane %v401, 1
        %v404 = vor.u32 %v399, %v403
        %v406 = vshrl.u32 %v371, 16
        %v408 = vshll.u32 %v371, 16
        %v410 = vrot.slane %v408, 1
        %v411 = vor.u32 %v406, %v410
        %v413 = vshrl.u32 %v372, 16
        %v415 = vshll.u32 %v372, 16
        %v417 = vrot.slane %v415, 1
        %v418 = vor.u32 %v413, %v417
        %v420 = vshrl.u32 %v373, 16
        %v422 = vshll.u32 %v373, 16
        %v424 = vrot.slane %v422, 1
        %v425 = vor.u32 %v420, %v424
        %v427 = vshrl.u32 %v374, 16
        %v429 = vshll.u32 %v374, 16
        %v431 = vrot.slane %v429, 1
        %v432 = vor.u32 %v427, %v431
        %v434 = vshrl.u32 %v375, 16
        %v436 = vshll.u32 %v375, 16
        %v438 = vrot.slane %v436, 1
        %v439 = vor.u32 %v434, %v438
        %v441 = vshrl.u32 %v376, 16
        %v443 = vshll.u32 %v376, 16
        %v445 = vrot.slane %v443, 1
        %v446 = vor.u32 %v441, %v445
        %447 = vrot.lane.b32.xlu0 %v383, 8
        %v448 = vpop.permute.xlu0 %447
        %449 = vrot.lane.b32.xlu0 %v390, 8
        %v450 = vpop.permute.xlu0 %449
        %451 = vrot.lane.b32.xlu0 %v397, 8
        %v452 = vpop.permute.xlu0 %451
        %453 = vrot.lane.b32.xlu0 %v404, 8
        %v454 = vpop.permute.xlu0 %453
        %455 = vrot.lane.b32.xlu0 %v411, 8
        %v456 = vpop.permute.xlu0 %455
        %457 = vrot.lane.b32.xlu0 %v418, 8
        %v458 = vpop.permute.xlu0 %457
        %459 = vrot.lane.b32.xlu0 %v425, 8
        %v460 = vpop.permute.xlu0 %459
        %461 = vrot.lane.b32.xlu0 %v432, 8
        %v462 = vpop.permute.xlu0 %461
        %463 = vrot.lane.b32.xlu0 %v439, 8
        %v464 = vpop.permute.xlu0 %463
        %465 = vrot.lane.b32.xlu0 %v446, 8
        %v466 = vpop.permute.xlu0 %465
        %vm467 = vcmask 31744
        %v470 = vsel %vm467, %v246, %v308
        %v473 = vsel %vm467, %v247, %v310
        %v476 = vsel %vm467, %v248, %v312
        %v479 = vsel %vm467, %v249, %v314
        %v482 = vsel %vm467, %v250, %v316
        %v485 = vsel %vm467, %v251, %v318
        %v488 = vsel %vm467, %v252, %v320
        %v491 = vsel %vm467, %v253, %v322
        %v494 = vsel %vm467, %v254, %v324
        %v497 = vsel %vm467, %v255, %v326
        %vm498 = vcmask 64512
        %v500 = vsel %vm498, %v470, %v448
        %v502 = vsel %vm498, %v473, %v450
        %v504 = vsel %vm498, %v476, %v452
        %v506 = vsel %vm498, %v479, %v454
        %v508 = vsel %vm498, %v482, %v456
        %v510 = vsel %vm498, %v485, %v458
        %v512 = vsel %vm498, %v488, %v460
        %v514 = vsel %vm498, %v491, %v462
        %v516 = vsel %vm498, %v494, %v464
        %v518 = vsel %vm498, %v497, %v466
        %v519 = vld [vmem:[%s1] sm:$0xf]
        %v520 = vld [vmem:[%s1 + $0x4] sm:$0x3]
        %s521 = scalar_lea.vmem %s242, 176
        %v522 = vld [vmem:[%s521] sm:$0xf]
        %v523 = vld [vmem:[%s521 + $0x8] sm:$0xf]
        %v524 = vld [vmem:[%s521 + $0x10] sm:$0xf]
        %v525 = vld [vmem:[%s521 + $0x18] sm:$0xf]
        %v526 = vld [vmem:[%s521 + $0x20] sm:$0xf]
        %v527 = vld [vmem:[%s521 + $0x28] sm:$0xf]
        %v528 = vld [vmem:[%s521 + $0x30] sm:$0xf]
        %v529 = vld [vmem:[%s521 + $0x38] sm:$0xf]
        %v530 = vld [vmem:[%s521 + $0x40] sm:$0xf]
        %v531 = vld [vmem:[%s521 + $0x48] sm:$0xf]
        %s532 = scalar_lea.vmem %s242, 264
        %v533 = vld [vmem:[%s532] sm:$0xf]
        %v534 = vld [vmem:[%s532 + $0x8] sm:$0xf]
        %v535 = vld [vmem:[%s532 + $0x10] sm:$0xf]
        %v536 = vld [vmem:[%s532 + $0x18] sm:$0xf]
        %v537 = vld [vmem:[%s532 + $0x20] sm:$0xf]
        %v538 = vld [vmem:[%s532 + $0x28] sm:$0xf]
        %v539 = vld [vmem:[%s532 + $0x30] sm:$0xf]
        %v540 = vld [vmem:[%s532 + $0x38] sm:$0xf]
        %v541 = vld [vmem:[%s532 + $0x40] sm:$0xf]
        %v542 = vld [vmem:[%s532 + $0x48] sm:$0xf]
        %v543 = vld [vmem:[%s521 + $0x4] sm:$0x1]
        %v544 = vld [vmem:[%s521 + $0xc] sm:$0x1]
        %v545 = vld [vmem:[%s521 + $0x14] sm:$0x1]
        %v546 = vld [vmem:[%s521 + $0x1c] sm:$0x1]
        %v547 = vld [vmem:[%s521 + $0x24] sm:$0x1]
        %v548 = vld [vmem:[%s521 + $0x2c] sm:$0x1]
        %v549 = vld [vmem:[%s521 + $0x34] sm:$0x1]
        %v550 = vld [vmem:[%s521 + $0x3c] sm:$0x1]
        %v551 = vld [vmem:[%s521 + $0x44] sm:$0x1]
        %v552 = vld [vmem:[%s521 + $0x4c] sm:$0x1]
        %v563 = vunpack.c.l.b16 %v533
        %v564 = vunpack.c.l.b16 %v534
        %v565 = vunpack.c.l.b16 %v535
        %v566 = vunpack.c.l.b16 %v536
        %v567 = vunpack.c.l.b16 %v537
        %v568 = vunpack.c.l.b16 %v538
        %v569 = vunpack.c.l.b16 %v539
        %v570 = vunpack.c.l.b16 %v540
        %v571 = vunpack.c.l.b16 %v541
        %v572 = vunpack.c.l.b16 %v542
        %v573 = vpack.c.b16 %v563, %v563
        %v574 = vpack.c.b16 %v564, %v564
        %v575 = vpack.c.b16 %v565, %v565
        %v576 = vpack.c.b16 %v566, %v566
        %v577 = vpack.c.b16 %v567, %v567
        %v578 = vpack.c.b16 %v568, %v568
        %v579 = vpack.c.b16 %v569, %v569
        %v580 = vpack.c.b16 %v570, %v570
        %v581 = vpack.c.b16 %v571, %v571
        %v582 = vpack.c.b16 %v572, %v572
        %583 = vrot.lane.b32.xlu0 %v573, 4
        %v584 = vpop.permute.xlu0 %583
        %585 = vrot.lane.b32.xlu0 %v574, 4
        %v586 = vpop.permute.xlu0 %585
        %587 = vrot.lane.b32.xlu0 %v575, 4
        %v588 = vpop.permute.xlu0 %587
        %589 = vrot.lane.b32.xlu0 %v576, 4
        %v590 = vpop.permute.xlu0 %589
        %591 = vrot.lane.b32.xlu0 %v577, 4
        %v592 = vpop.permute.xlu0 %591
        %593 = vrot.lane.b32.xlu0 %v578, 4
        %v594 = vpop.permute.xlu0 %593
        %595 = vrot.lane.b32.xlu0 %v579, 4
        %v596 = vpop.permute.xlu0 %595
        %597 = vrot.lane.b32.xlu0 %v580, 4
        %v598 = vpop.permute.xlu0 %597
        %599 = vrot.lane.b32.xlu0 %v581, 4
        %v600 = vpop.permute.xlu0 %599
        %601 = vrot.lane.b32.xlu0 %v582, 4
        %v602 = vpop.permute.xlu0 %601
        %v623 = vunpack.c.l.b16 %v522
        %v624 = vunpack.c.l.b16 %v543
        %v625 = vunpack.c.l.b16 %v523
        %v626 = vunpack.c.l.b16 %v544
        %v627 = vunpack.c.l.b16 %v524
        %v628 = vunpack.c.l.b16 %v545
        %v629 = vunpack.c.l.b16 %v525
        %v630 = vunpack.c.l.b16 %v546
        %v631 = vunpack.c.l.b16 %v526
        %v632 = vunpack.c.l.b16 %v547
        %v633 = vunpack.c.l.b16 %v527
        %v634 = vunpack.c.l.b16 %v548
        %v635 = vunpack.c.l.b16 %v528
        %v636 = vunpack.c.l.b16 %v549
        %v637 = vunpack.c.l.b16 %v529
        %v638 = vunpack.c.l.b16 %v550
        %v639 = vunpack.c.l.b16 %v530
        %v640 = vunpack.c.l.b16 %v551
        %v641 = vunpack.c.l.b16 %v531
        %v642 = vunpack.c.l.b16 %v552
        %v643 = vpack.c.b16 %v624, %v623
        %v644 = vpack.c.b16 %v626, %v625
        %v645 = vpack.c.b16 %v628, %v627
        %v646 = vpack.c.b16 %v630, %v629
        %v647 = vpack.c.b16 %v632, %v631
        %v648 = vpack.c.b16 %v634, %v633
        %v649 = vpack.c.b16 %v636, %v635
        %v650 = vpack.c.b16 %v638, %v637
        %v651 = vpack.c.b16 %v640, %v639
        %v652 = vpack.c.b16 %v642, %v641
        %v654 = vshrl.u32 %v643, 16
        %v656 = vshll.u32 %v643, 16
        %v658 = vrot.slane %v656, 1
        %v659 = vor.u32 %v654, %v658
        %v661 = vshrl.u32 %v644, 16
        %v663 = vshll.u32 %v644, 16
        %v665 = vrot.slane %v663, 1
        %v666 = vor.u32 %v661, %v665
        %v668 = vshrl.u32 %v645, 16
        %v670 = vshll.u32 %v645, 16
        %v672 = vrot.slane %v670, 1
        %v673 = vor.u32 %v668, %v672
        %v675 = vshrl.u32 %v646, 16
        %v677 = vshll.u32 %v646, 16
        %v679 = vrot.slane %v677, 1
        %v680 = vor.u32 %v675, %v679
        %v682 = vshrl.u32 %v647, 16
        %v684 = vshll.u32 %v647, 16
        %v686 = vrot.slane %v684, 1
        %v687 = vor.u32 %v682, %v686
        %v689 = vshrl.u32 %v648, 16
        %v691 = vshll.u32 %v648, 16
        %v693 = vrot.slane %v691, 1
        %v694 = vor.u32 %v689, %v693
        %v696 = vshrl.u32 %v649, 16
        %v698 = vshll.u32 %v649, 16
        %v700 = vrot.slane %v698, 1
        %v701 = vor.u32 %v696, %v700
        %v703 = vshrl.u32 %v650, 16
        %v705 = vshll.u32 %v650, 16
        %v707 = vrot.slane %v705, 1
        %v708 = vor.u32 %v703, %v707
        %v710 = vshrl.u32 %v651, 16
        %v712 = vshll.u32 %v651, 16
        %v714 = vrot.slane %v712, 1
        %v715 = vor.u32 %v710, %v714
        %v717 = vshrl.u32 %v652, 16
        %v719 = vshll.u32 %v652, 16
        %v721 = vrot.slane %v719, 1
        %v722 = vor.u32 %v717, %v721
        %723 = vrot.lane.b32.xlu0 %v659, 8
        %v724 = vpop.permute.xlu0 %723
        %725 = vrot.lane.b32.xlu0 %v666, 8
        %v726 = vpop.permute.xlu0 %725
        %727 = vrot.lane.b32.xlu0 %v673, 8
        %v728 = vpop.permute.xlu0 %727
        %729 = vrot.lane.b32.xlu0 %v680, 8
        %v730 = vpop.permute.xlu0 %729
        %731 = vrot.lane.b32.xlu0 %v687, 8
        %v732 = vpop.permute.xlu0 %731
        %733 = vrot.lane.b32.xlu0 %v694, 8
        %v734 = vpop.permute.xlu0 %733
        %735 = vrot.lane.b32.xlu0 %v701, 8
        %v736 = vpop.permute.xlu0 %735
        %737 = vrot.lane.b32.xlu0 %v708, 8
        %v738 = vpop.permute.xlu0 %737
        %739 = vrot.lane.b32.xlu0 %v715, 8
        %v740 = vpop.permute.xlu0 %739
        %741 = vrot.lane.b32.xlu0 %v722, 8
        %v742 = vpop.permute.xlu0 %741
        %v745 = vsel %vm467, %v522, %v584
        %v748 = vsel %vm467, %v523, %v586
        %v751 = vsel %vm467, %v524, %v588
        %v754 = vsel %vm467, %v525, %v590
        %v757 = vsel %vm467, %v526, %v592
        %v760 = vsel %vm467, %v527, %v594
        %v763 = vsel %vm467, %v528, %v596
        %v766 = vsel %vm467, %v529, %v598
        %v769 = vsel %vm467, %v530, %v600
        %v772 = vsel %vm467, %v531, %v602
        %v774 = vsel %vm498, %v745, %v724
        %v776 = vsel %vm498, %v748, %v726
        %v778 = vsel %vm498, %v751, %v728
        %v780 = vsel %vm498, %v754, %v730
        %v782 = vsel %vm498, %v757, %v732
        %v784 = vsel %vm498, %v760, %v734
        %v786 = vsel %vm498, %v763, %v736
        %v788 = vsel %vm498, %v766, %v738
        %v790 = vsel %vm498, %v769, %v740
        %v792 = vsel %vm498, %v772, %v742
        %s793 = scalar_lea.vmem %s1, 8
        %v794 = vld [vmem:[%s793] sm:$0xf]
        %v795 = vld [vmem:[%s793 + $0x4] sm:$0x3]
        %v806 = vunpack.c.l.b16 %v774
        %v807 = vunpack.c.l.b16 %v776
        %v808 = vunpack.c.l.b16 %v778
        %v809 = vunpack.c.l.b16 %v780
        %v810 = vunpack.c.l.b16 %v782
        %v811 = vunpack.c.l.b16 %v784
        %v812 = vunpack.c.l.b16 %v786
        %v813 = vunpack.c.l.b16 %v788
        %v814 = vunpack.c.l.b16 %v790
        %v815 = vunpack.c.l.b16 %v792
        %v816 = vpack.c.b16 %v807, %v806
        %v817 = vpack.c.b16 %v809, %v808
        %v818 = vpack.c.b16 %v811, %v810
        %v819 = vpack.c.b16 %v813, %v812
        %v820 = vpack.c.b16 %v815, %v814
        %v823 = vunpack.c.l.b16 %v794
        %v824 = vunpack.c.l.b16 %v795
        %v825 = vpack.c.b16 %v824, %v823
        %vm826 = vcmask 97280
        %v828 = vsel %vm826, %v816, 0
        %v831 = vsel %vm826, %v817, 0
        %v834 = vsel %vm826, %v818, 0
        %v837 = vsel %vm826, %v819, 0
        %v840 = vsel %vm826, %v820, 0
        %vm842 = vcmask 1045504
        %v844 = vsel %vm842, %v825, 0
        %846 = vmatprep.subr.bf16.mxu0 0
        %847 = vmatpush1.bf16.msra.mxu0 0
        %848 = vmatprep.subr.bf16.mxu0 0
        %849 = vmatpush1.bf16.msra.mxu0 0
        %850 = vmatprep.subr.bf16.mxu0 0
        %851 = vmatpush1.bf16.msra.mxu0 0
        %852 = vmatprep.subr.bf16.mxu0 0
        %853 = vmatpush1.bf16.msra.mxu0 0
        %854 = vmatprep.subr.bf16.mxu0 0
        %855 = vmatpush1.bf16.msra.mxu0 0
        %856 = vmatprep.subr.bf16.mxu0 0
        %857 = vmatpush1.bf16.msra.mxu0 0
        %858 = vmatprep.subr.bf16.mxu0 0
        %859 = vmatpush1.bf16.msra.mxu0 0
        %860 = vmatprep.subr.bf16.mxu0 0
        %861 = vmatpush1.bf16.msra.mxu0 %v844
        %862 = vmatprep.subr.bf16.mxu0 0
        %863 = vmatpush2.bf16.msra.mxu0 0
        %864 = vmatprep.subr.bf16.mxu0 0
        %865 = vmatpush2.bf16.msra.mxu0 0
        %866 = vmatprep.subr.bf16.mxu0 0
        %867 = vmatpush2.bf16.msra.mxu0 0
        %868 = vmatprep.subr.bf16.mxu0 0
        %869 = vmatpush2.bf16.msra.mxu0 0
        %870 = vmatprep.subr.bf16.mxu0 0
        %871 = vmatpush2.bf16.msra.mxu0 0
        %872 = vmatprep.subr.bf16.mxu0 0
        %873 = vmatpush2.bf16.msra.mxu0 0
        %874 = vmatprep.subr.bf16.mxu0 0
        %875 = vmatpush2.bf16.msra.mxu0 0
        %876 = vmatprep.subr.bf16.mxu0 0
        %877 = vmatpush2.bf16.msra.mxu0 0
        %878 = vmatprep.mubr.bf16.mxu0 0
        %879 = vmatmul.mubr.bf16.gmra.mxu0 %v828
        %v880 = vpop.f32.mrf.mxu0
        %v881 = vadd.f32 0.0, %v880
        %v882 = vpop.f32.mrf.mxu0
        %v883 = vpop.f32.mrf.mxu0
        %v884 = vadd.f32 0.0, %v883
        %v885 = vpop.f32.mrf.mxu0
        %886 = vmatprep.mubr.bf16.mxu0 0
        %887 = vmatmul.mubr.bf16.gmra.mxu0 %v831
        %v888 = vpop.f32.mrf.mxu0
        %v889 = vadd.f32 0.0, %v888
        %v890 = vpop.f32.mrf.mxu0
        %v891 = vpop.f32.mrf.mxu0
        %v892 = vadd.f32 0.0, %v891
        %v893 = vpop.f32.mrf.mxu0
        %894 = vmatprep.mubr.bf16.mxu0 0
        %895 = vmatmul.mubr.bf16.gmra.mxu0 %v834
        %v896 = vpop.f32.mrf.mxu0
        %v897 = vadd.f32 0.0, %v896
        %v898 = vpop.f32.mrf.mxu0
        %v899 = vpop.f32.mrf.mxu0
        %v900 = vadd.f32 0.0, %v899
        %v901 = vpop.f32.mrf.mxu0
        %902 = vmatprep.mubr.bf16.mxu0 0
        %903 = vmatmul.mubr.bf16.gmra.mxu0 %v837
        %v904 = vpop.f32.mrf.mxu0
        %v905 = vadd.f32 0.0, %v904
        %v906 = vpop.f32.mrf.mxu0
        %v907 = vpop.f32.mrf.mxu0
        %v908 = vadd.f32 0.0, %v907
        %v909 = vpop.f32.mrf.mxu0
        %910 = vmatprep.mubr.bf16.mxu0 0
        %911 = vmatmul.mubr.bf16.gmra.mxu0 %v840
        %v912 = vpop.f32.mrf.mxu0
        %v913 = vadd.f32 0.0, %v912
        %v914 = vpop.f32.mrf.mxu0
        %v915 = vpop.f32.mrf.mxu0
        %v916 = vadd.f32 0.0, %v915
        %v917 = vpop.f32.mrf.mxu0
        %918 = vdwg.mxu0
        %v929 = vunpack.c.l.b16 %v500
        %v930 = vunpack.c.l.b16 %v502
        %v931 = vunpack.c.l.b16 %v504
        %v932 = vunpack.c.l.b16 %v506
        %v933 = vunpack.c.l.b16 %v508
        %v934 = vunpack.c.l.b16 %v510
        %v935 = vunpack.c.l.b16 %v512
        %v936 = vunpack.c.l.b16 %v514
        %v937 = vunpack.c.l.b16 %v516
        %v938 = vunpack.c.l.b16 %v518
        %v939 = vpack.c.b16 %v930, %v929
        %v940 = vpack.c.b16 %v932, %v931
        %v941 = vpack.c.b16 %v934, %v933
        %v942 = vpack.c.b16 %v936, %v935
        %v943 = vpack.c.b16 %v938, %v937
        %v946 = vunpack.c.l.b16 %v519
        %v947 = vunpack.c.l.b16 %v520
        %v948 = vpack.c.b16 %v947, %v946
        %v950 = vsel %vm826, %v939, 0
        %v953 = vsel %vm826, %v940, 0
        %v956 = vsel %vm826, %v941, 0
        %v959 = vsel %vm826, %v942, 0
        %v962 = vsel %vm826, %v943, 0
        %v965 = vsel %vm842, %v948, 0
        %967 = vmatprep.subr.bf16.mxu0 0
        %968 = vmatpush1.bf16.msra.mxu0 0
        %969 = vmatprep.subr.bf16.mxu0 0
        %970 = vmatpush1.bf16.msra.mxu0 0
        %971 = vmatprep.subr.bf16.mxu0 0
        %972 = vmatpush1.bf16.msra.mxu0 0
        %973 = vmatprep.subr.bf16.mxu0 0
        %974 = vmatpush1.bf16.msra.mxu0 0
        %975 = vmatprep.subr.bf16.mxu0 0
        %976 = vmatpush1.bf16.msra.mxu0 0
        %977 = vmatprep.subr.bf16.mxu0 0
        %978 = vmatpush1.bf16.msra.mxu0 0
        %979 = vmatprep.subr.bf16.mxu0 0
        %980 = vmatpush1.bf16.msra.mxu0 0
        %981 = vmatprep.subr.bf16.mxu0 0
        %982 = vmatpush1.bf16.msra.mxu0 %v965
        %983 = vmatprep.subr.bf16.mxu0 0
        %984 = vmatpush2.bf16.msra.mxu0 0
        %985 = vmatprep.subr.bf16.mxu0 0
        %986 = vmatpush2.bf16.msra.mxu0 0
        %987 = vmatprep.subr.bf16.mxu0 0
        %988 = vmatpush2.bf16.msra.mxu0 0
        %989 = vmatprep.subr.bf16.mxu0 0
        %990 = vmatpush2.bf16.msra.mxu0 0
        %991 = vmatprep.subr.bf16.mxu0 0
        %992 = vmatpush2.bf16.msra.mxu0 0
        %993 = vmatprep.subr.bf16.mxu0 0
        %994 = vmatpush2.bf16.msra.mxu0 0
        %995 = vmatprep.subr.bf16.mxu0 0
        %996 = vmatpush2.bf16.msra.mxu0 0
        %997 = vmatprep.subr.bf16.mxu0 0
        %998 = vmatpush2.bf16.msra.mxu0 0
        %999 = vmatprep.mubr.bf16.mxu0 0
        %1000 = vmatmul.mubr.bf16.gmra.mxu0 %v950
        %v1001 = vpop.f32.mrf.mxu0
        %v1002 = vadd.f32 %v881, %v1001
        %v1003 = vpop.f32.mrf.mxu0
        %v1004 = vpop.f32.mrf.mxu0
        %v1005 = vadd.f32 %v884, %v1004
        %v1006 = vpop.f32.mrf.mxu0
        %1007 = vmatprep.mubr.bf16.mxu0 0
        %1008 = vmatmul.mubr.bf16.gmra.mxu0 %v953
        %v1009 = vpop.f32.mrf.mxu0
        %v1010 = vadd.f32 %v889, %v1009
        %v1011 = vpop.f32.mrf.mxu0
        %v1012 = vpop.f32.mrf.mxu0
        %v1013 = vadd.f32 %v892, %v1012
        %v1014 = vpop.f32.mrf.mxu0
        %1015 = vmatprep.mubr.bf16.mxu0 0
        %1016 = vmatmul.mubr.bf16.gmra.mxu0 %v956
        %v1017 = vpop.f32.mrf.mxu0
        %v1018 = vadd.f32 %v897, %v1017
        %v1019 = vpop.f32.mrf.mxu0
        %v1020 = vpop.f32.mrf.mxu0
        %v1021 = vadd.f32 %v900, %v1020
        %v1022 = vpop.f32.mrf.mxu0
        %1023 = vmatprep.mubr.bf16.mxu0 0
        %1024 = vmatmul.mubr.bf16.gmra.mxu0 %v959
        %v1025 = vpop.f32.mrf.mxu0
        %v1026 = vadd.f32 %v905, %v1025
        %v1027 = vpop.f32.mrf.mxu0
        %v1028 = vpop.f32.mrf.mxu0
        %v1029 = vadd.f32 %v908, %v1028
        %v1030 = vpop.f32.mrf.mxu0
        %1031 = vmatprep.mubr.bf16.mxu0 0
        %1032 = vmatmul.mubr.bf16.gmra.mxu0 %v962
        %v1033 = vpop.f32.mrf.mxu0
        %v1034 = vadd.f32 %v913, %v1033
        %v1035 = vpop.f32.mrf.mxu0
        %v1036 = vpop.f32.mrf.mxu0
        %v1037 = vadd.f32 %v916, %v1036
        %v1038 = vpop.f32.mrf.mxu0
        %1039 = vdwg.mxu0
        %s1040 = scalar_lea.vmem %s242, 8
        %v1041 = vld [vmem:[%s1040] sm:$0xf]
        %v1042 = vld [vmem:[%s1040 + $0x8] sm:$0xf]
        %v1043 = vld [vmem:[%s1040 + $0x10] sm:$0xf]
        %v1044 = vld [vmem:[%s1040 + $0x18] sm:$0xf]
        %v1045 = vld [vmem:[%s1040 + $0x20] sm:$0xf]
        %v1046 = vld [vmem:[%s1040 + $0x28] sm:$0xf]
        %v1047 = vld [vmem:[%s1040 + $0x30] sm:$0xf]
        %v1048 = vld [vmem:[%s1040 + $0x38] sm:$0xf]
        %v1049 = vld [vmem:[%s1040 + $0x40] sm:$0xf]
        %v1050 = vld [vmem:[%s1040 + $0x48] sm:$0xf]
        %s1051 = scalar_lea.vmem %s242, 96
        %v1052 = vld [vmem:[%s1051] sm:$0xf]
        %v1053 = vld [vmem:[%s1051 + $0x8] sm:$0xf]
        %v1054 = vld [vmem:[%s1051 + $0x10] sm:$0xf]
        %v1055 = vld [vmem:[%s1051 + $0x18] sm:$0xf]
        %v1056 = vld [vmem:[%s1051 + $0x20] sm:$0xf]
        %v1057 = vld [vmem:[%s1051 + $0x28] sm:$0xf]
        %v1058 = vld [vmem:[%s1051 + $0x30] sm:$0xf]
        %v1059 = vld [vmem:[%s1051 + $0x38] sm:$0xf]
        %v1060 = vld [vmem:[%s1051 + $0x40] sm:$0xf]
        %v1061 = vld [vmem:[%s1051 + $0x48] sm:$0xf]
        %v1062 = vld [vmem:[%s1040 + $0x4] sm:$0x1]
        %v1063 = vld [vmem:[%s1040 + $0xc] sm:$0x1]
        %v1064 = vld [vmem:[%s1040 + $0x14] sm:$0x1]
        %v1065 = vld [vmem:[%s1040 + $0x1c] sm:$0x1]
        %v1066 = vld [vmem:[%s1040 + $0x24] sm:$0x1]
        %v1067 = vld [vmem:[%s1040 + $0x2c] sm:$0x1]
        %v1068 = vld [vmem:[%s1040 + $0x34] sm:$0x1]
        %v1069 = vld [vmem:[%s1040 + $0x3c] sm:$0x1]
        %v1070 = vld [vmem:[%s1040 + $0x44] sm:$0x1]
        %v1071 = vld [vmem:[%s1040 + $0x4c] sm:$0x1]
        %v1082 = vunpack.c.l.b16 %v1052
        %v1083 = vunpack.c.l.b16 %v1053
        %v1084 = vunpack.c.l.b16 %v1054
        %v1085 = vunpack.c.l.b16 %v1055
        %v1086 = vunpack.c.l.b16 %v1056
        %v1087 = vunpack.c.l.b16 %v1057
        %v1088 = vunpack.c.l.b16 %v1058
        %v1089 = vunpack.c.l.b16 %v1059
        %v1090 = vunpack.c.l.b16 %v1060
        %v1091 = vunpack.c.l.b16 %v1061
        %v1092 = vpack.c.b16 %v1082, %v1082
        %v1093 = vpack.c.b16 %v1083, %v1083
        %v1094 = vpack.c.b16 %v1084, %v1084
        %v1095 = vpack.c.b16 %v1085, %v1085
        %v1096 = vpack.c.b16 %v1086, %v1086
        %v1097 = vpack.c.b16 %v1087, %v1087
        %v1098 = vpack.c.b16 %v1088, %v1088
        %v1099 = vpack.c.b16 %v1089, %v1089
        %v1100 = vpack.c.b16 %v1090, %v1090
        %v1101 = vpack.c.b16 %v1091, %v1091
        %1102 = vrot.lane.b32.xlu0 %v1092, 4
        %v1103 = vpop.permute.xlu0 %1102
        %1104 = vrot.lane.b32.xlu0 %v1093, 4
        %v1105 = vpop.permute.xlu0 %1104
        %1106 = vrot.lane.b32.xlu0 %v1094, 4
        %v1107 = vpop.permute.xlu0 %1106
        %1108 = vrot.lane.b32.xlu0 %v1095, 4
        %v1109 = vpop.permute.xlu0 %1108
        %1110 = vrot.lane.b32.xlu0 %v1096, 4
        %v1111 = vpop.permute.xlu0 %1110
        %1112 = vrot.lane.b32.xlu0 %v1097, 4
        %v1113 = vpop.permute.xlu0 %1112
        %1114 = vrot.lane.b32.xlu0 %v1098, 4
        %v1115 = vpop.permute.xlu0 %1114
        %1116 = vrot.lane.b32.xlu0 %v1099, 4
        %v1117 = vpop.permute.xlu0 %1116
        %1118 = vrot.lane.b32.xlu0 %v1100, 4
        %v1119 = vpop.permute.xlu0 %1118
        %1120 = vrot.lane.b32.xlu0 %v1101, 4
        %v1121 = vpop.permute.xlu0 %1120
        %v1142 = vunpack.c.l.b16 %v1041
        %v1143 = vunpack.c.l.b16 %v1062
        %v1144 = vunpack.c.l.b16 %v1042
        %v1145 = vunpack.c.l.b16 %v1063
        %v1146 = vunpack.c.l.b16 %v1043
        %v1147 = vunpack.c.l.b16 %v1064
        %v1148 = vunpack.c.l.b16 %v1044
        %v1149 = vunpack.c.l.b16 %v1065
        %v1150 = vunpack.c.l.b16 %v1045
        %v1151 = vunpack.c.l.b16 %v1066
        %v1152 = vunpack.c.l.b16 %v1046
        %v1153 = vunpack.c.l.b16 %v1067
        %v1154 = vunpack.c.l.b16 %v1047
        %v1155 = vunpack.c.l.b16 %v1068
        %v1156 = vunpack.c.l.b16 %v1048
        %v1157 = vunpack.c.l.b16 %v1069
        %v1158 = vunpack.c.l.b16 %v1049
        %v1159 = vunpack.c.l.b16 %v1070
        %v1160 = vunpack.c.l.b16 %v1050
        %v1161 = vunpack.c.l.b16 %v1071
        %v1162 = vpack.c.b16 %v1143, %v1142
        %v1163 = vpack.c.b16 %v1145, %v1144
        %v1164 = vpack.c.b16 %v1147, %v1146
        %v1165 = vpack.c.b16 %v1149, %v1148
        %v1166 = vpack.c.b16 %v1151, %v1150
        %v1167 = vpack.c.b16 %v1153, %v1152
        %v1168 = vpack.c.b16 %v1155, %v1154
        %v1169 = vpack.c.b16 %v1157, %v1156
        %v1170 = vpack.c.b16 %v1159, %v1158
        %v1171 = vpack.c.b16 %v1161, %v1160
        %v1173 = vshrl.u32 %v1162, 16
        %v1175 = vshll.u32 %v1162, 16
        %v1177 = vrot.slane %v1175, 1
        %v1178 = vor.u32 %v1173, %v1177
        %v1180 = vshrl.u32 %v1163, 16
        %v1182 = vshll.u32 %v1163, 16
        %v1184 = vrot.slane %v1182, 1
        %v1185 = vor.u32 %v1180, %v1184
        %v1187 = vshrl.u32 %v1164, 16
        %v1189 = vshll.u32 %v1164, 16
        %v1191 = vrot.slane %v1189, 1
        %v1192 = vor.u32 %v1187, %v1191
        %v1194 = vshrl.u32 %v1165, 16
        %v1196 = vshll.u32 %v1165, 16
        %v1198 = vrot.slane %v1196, 1
        %v1199 = vor.u32 %v1194, %v1198
        %v1201 = vshrl.u32 %v1166, 16
        %v1203 = vshll.u32 %v1166, 16
        %v1205 = vrot.slane %v1203, 1
        %v1206 = vor.u32 %v1201, %v1205
        %v1208 = vshrl.u32 %v1167, 16
        %v1210 = vshll.u32 %v1167, 16
        %v1212 = vrot.slane %v1210, 1
        %v1213 = vor.u32 %v1208, %v1212
        %v1215 = vshrl.u32 %v1168, 16
        %v1217 = vshll.u32 %v1168, 16
        %v1219 = vrot.slane %v1217, 1
        %v1220 = vor.u32 %v1215, %v1219
        %v1222 = vshrl.u32 %v1169, 16
        %v1224 = vshll.u32 %v1169, 16
        %v1226 = vrot.slane %v1224, 1
        %v1227 = vor.u32 %v1222, %v1226
        %v1229 = vshrl.u32 %v1170, 16
        %v1231 = vshll.u32 %v1170, 16
        %v1233 = vrot.slane %v1231, 1
        %v1234 = vor.u32 %v1229, %v1233
        %v1236 = vshrl.u32 %v1171, 16
        %v1238 = vshll.u32 %v1171, 16
        %v1240 = vrot.slane %v1238, 1
        %v1241 = vor.u32 %v1236, %v1240
        %1242 = vrot.lane.b32.xlu0 %v1178, 8
        %v1243 = vpop.permute.xlu0 %1242
        %1244 = vrot.lane.b32.xlu0 %v1185, 8
        %v1245 = vpop.permute.xlu0 %1244
        %1246 = vrot.lane.b32.xlu0 %v1192, 8
        %v1247 = vpop.permute.xlu0 %1246
        %1248 = vrot.lane.b32.xlu0 %v1199, 8
        %v1249 = vpop.permute.xlu0 %1248
        %1250 = vrot.lane.b32.xlu0 %v1206, 8
        %v1251 = vpop.permute.xlu0 %1250
        %1252 = vrot.lane.b32.xlu0 %v1213, 8
        %v1253 = vpop.permute.xlu0 %1252
        %1254 = vrot.lane.b32.xlu0 %v1220, 8
        %v1255 = vpop.permute.xlu0 %1254
        %1256 = vrot.lane.b32.xlu0 %v1227, 8
        %v1257 = vpop.permute.xlu0 %1256
        %1258 = vrot.lane.b32.xlu0 %v1234, 8
        %v1259 = vpop.permute.xlu0 %1258
        %1260 = vrot.lane.b32.xlu0 %v1241, 8
        %v1261 = vpop.permute.xlu0 %1260
        %v1264 = vsel %vm467, %v1041, %v1103
        %v1267 = vsel %vm467, %v1042, %v1105
        %v1270 = vsel %vm467, %v1043, %v1107
        %v1273 = vsel %vm467, %v1044, %v1109
        %v1276 = vsel %vm467, %v1045, %v1111
        %v1279 = vsel %vm467, %v1046, %v1113
        %v1282 = vsel %vm467, %v1047, %v1115
        %v1285 = vsel %vm467, %v1048, %v1117
        %v1288 = vsel %vm467, %v1049, %v1119
        %v1291 = vsel %vm467, %v1050, %v1121
        %v1293 = vsel %vm498, %v1264, %v1243
        %v1295 = vsel %vm498, %v1267, %v1245
        %v1297 = vsel %vm498, %v1270, %v1247
        %v1299 = vsel %vm498, %v1273, %v1249
        %v1301 = vsel %vm498, %v1276, %v1251
        %v1303 = vsel %vm498, %v1279, %v1253
        %v1305 = vsel %vm498, %v1282, %v1255
        %v1307 = vsel %vm498, %v1285, %v1257
        %v1309 = vsel %vm498, %v1288, %v1259
        %v1311 = vsel %vm498, %v1291, %v1261
        %s1312 = scalar_lea.vmem %s1, 16
        %v1313 = vld [vmem:[%s1312] sm:$0xf]
        %v1314 = vld [vmem:[%s1312 + $0x4] sm:$0x3]
        %v1325 = vunpack.c.l.b16 %v1293
        %v1326 = vunpack.c.l.b16 %v1295
        %v1327 = vunpack.c.l.b16 %v1297
        %v1328 = vunpack.c.l.b16 %v1299
        %v1329 = vunpack.c.l.b16 %v1301
        %v1330 = vunpack.c.l.b16 %v1303
        %v1331 = vunpack.c.l.b16 %v1305
        %v1332 = vunpack.c.l.b16 %v1307
        %v1333 = vunpack.c.l.b16 %v1309
        %v1334 = vunpack.c.l.b16 %v1311
        %v1335 = vpack.c.b16 %v1326, %v1325
        %v1336 = vpack.c.b16 %v1328, %v1327
        %v1337 = vpack.c.b16 %v1330, %v1329
        %v1338 = vpack.c.b16 %v1332, %v1331
        %v1339 = vpack.c.b16 %v1334, %v1333
        %v1342 = vunpack.c.l.b16 %v1313
        %v1343 = vunpack.c.l.b16 %v1314
        %v1344 = vpack.c.b16 %v1343, %v1342
        %v1346 = vsel %vm826, %v1335, 0
        %v1349 = vsel %vm826, %v1336, 0
        %v1352 = vsel %vm826, %v1337, 0
        %v1355 = vsel %vm826, %v1338, 0
        %v1358 = vsel %vm826, %v1339, 0
        %v1361 = vsel %vm842, %v1344, 0
        %1363 = vmatprep.subr.bf16.mxu0 0
        %1364 = vmatpush1.bf16.msra.mxu0 0
        %1365 = vmatprep.subr.bf16.mxu0 0
        %1366 = vmatpush1.bf16.msra.mxu0 0
        %1367 = vmatprep.subr.bf16.mxu0 0
        %1368 = vmatpush1.bf16.msra.mxu0 0
        %1369 = vmatprep.subr.bf16.mxu0 0
        %1370 = vmatpush1.bf16.msra.mxu0 0
        %1371 = vmatprep.subr.bf16.mxu0 0
        %1372 = vmatpush1.bf16.msra.mxu0 0
        %1373 = vmatprep.subr.bf16.mxu0 0
        %1374 = vmatpush1.bf16.msra.mxu0 0
        %1375 = vmatprep.subr.bf16.mxu0 0
        %1376 = vmatpush1.bf16.msra.mxu0 0
        %1377 = vmatprep.subr.bf16.mxu0 0
        %1378 = vmatpush1.bf16.msra.mxu0 %v1361
        %1379 = vmatprep.subr.bf16.mxu0 0
        %1380 = vmatpush2.bf16.msra.mxu0 0
        %1381 = vmatprep.subr.bf16.mxu0 0
        %1382 = vmatpush2.bf16.msra.mxu0 0
        %1383 = vmatprep.subr.bf16.mxu0 0
        %1384 = vmatpush2.bf16.msra.mxu0 0
        %1385 = vmatprep.subr.bf16.mxu0 0
        %1386 = vmatpush2.bf16.msra.mxu0 0
        %1387 = vmatprep.subr.bf16.mxu0 0
        %1388 = vmatpush2.bf16.msra.mxu0 0
        %1389 = vmatprep.subr.bf16.mxu0 0
        %1390 = vmatpush2.bf16.msra.mxu0 0
        %1391 = vmatprep.subr.bf16.mxu0 0
        %1392 = vmatpush2.bf16.msra.mxu0 0
        %1393 = vmatprep.subr.bf16.mxu0 0
        %1394 = vmatpush2.bf16.msra.mxu0 0
        %1395 = vmatprep.mubr.bf16.mxu0 0
        %1396 = vmatmul.mubr.bf16.gmra.mxu0 %v1346
        %v1397 = vpop.f32.mrf.mxu0
        %v1398 = vadd.f32 0.0, %v1397
        %v1399 = vpop.f32.mrf.mxu0
        %v1400 = vpop.f32.mrf.mxu0
        %v1401 = vadd.f32 0.0, %v1400
        %v1402 = vpop.f32.mrf.mxu0
        %1403 = vmatprep.mubr.bf16.mxu0 0
        %1404 = vmatmul.mubr.bf16.gmra.mxu0 %v1349
        %v1405 = vpop.f32.mrf.mxu0
        %v1406 = vadd.f32 0.0, %v1405
        %v1407 = vpop.f32.mrf.mxu0
        %v1408 = vpop.f32.mrf.mxu0
        %v1409 = vadd.f32 0.0, %v1408
        %v1410 = vpop.f32.mrf.mxu0
        %1411 = vmatprep.mubr.bf16.mxu0 0
        %1412 = vmatmul.mubr.bf16.gmra.mxu0 %v1352
        %v1413 = vpop.f32.mrf.mxu0
        %v1414 = vadd.f32 0.0, %v1413
        %v1415 = vpop.f32.mrf.mxu0
        %v1416 = vpop.f32.mrf.mxu0
        %v1417 = vadd.f32 0.0, %v1416
        %v1418 = vpop.f32.mrf.mxu0
        %1419 = vmatprep.mubr.bf16.mxu0 0
        %1420 = vmatmul.mubr.bf16.gmra.mxu0 %v1355
        %v1421 = vpop.f32.mrf.mxu0
        %v1422 = vadd.f32 0.0, %v1421
        %v1423 = vpop.f32.mrf.mxu0
        %v1424 = vpop.f32.mrf.mxu0
        %v1425 = vadd.f32 0.0, %v1424
        %v1426 = vpop.f32.mrf.mxu0
        %1427 = vmatprep.mubr.bf16.mxu0 0
        %1428 = vmatmul.mubr.bf16.gmra.mxu0 %v1358
        %v1429 = vpop.f32.mrf.mxu0
        %v1430 = vadd.f32 0.0, %v1429
        %v1431 = vpop.f32.mrf.mxu0
        %v1432 = vpop.f32.mrf.mxu0
        %v1433 = vadd.f32 0.0, %v1432
        %v1434 = vpop.f32.mrf.mxu0
        %1435 = vdwg.mxu0
        %v1436 = vadd.f32 %v1002, %v1398
        %v1437 = vadd.f32 %v1005, %v1401
        %v1438 = vadd.f32 %v1010, %v1406
        %v1439 = vadd.f32 %v1013, %v1409
        %v1440 = vadd.f32 %v1018, %v1414
        %v1441 = vadd.f32 %v1021, %v1417
        %v1442 = vadd.f32 %v1026, %v1422
        %v1443 = vadd.f32 %v1029, %v1425
        %v1444 = vadd.f32 %v1034, %v1430
        %v1445 = vadd.f32 %v1037, %v1433
        %v1446 = vld [vmem:[%s2] sm:$0x1]
        %v1448 = vlaneseq
        %v1449 = vshrl.u32 %v1448, 7
        %v1450 = vsub.s32 0, %v1449
        %v1451 = vrot.slane %v1446, %v1450
        %v1453 = vadd.f32 %v1436, %v1451
        %v1454 = vadd.f32 %v1437, %v1451
        %v1455 = vadd.f32 %v1438, %v1451
        %v1456 = vadd.f32 %v1439, %v1451
        %v1457 = vadd.f32 %v1440, %v1451
        %v1458 = vadd.f32 %v1441, %v1451
        %v1459 = vadd.f32 %v1442, %v1451
        %v1460 = vadd.f32 %v1443, %v1451
        %v1461 = vadd.f32 %v1444, %v1451
        %v1462 = vadd.f32 %v1445, %v1451
        %v1463 = vmax.f32 %v1453, 0.0
        %v1464 = vmax.f32 %v1454, 0.0
        %v1465 = vmax.f32 %v1455, 0.0
        %v1466 = vmax.f32 %v1456, 0.0
        %v1467 = vmax.f32 %v1457, 0.0
        %v1468 = vmax.f32 %v1458, 0.0
        %v1469 = vmax.f32 %v1459, 0.0
        %v1470 = vmax.f32 %v1460, 0.0
        %v1471 = vmax.f32 %v1461, 0.0
        %v1472 = vmax.f32 %v1462, 0.0
        %v1473 = vpack.c.bf16 %v1463, %v1463
        %v1474 = vpack.c.bf16 %v1464, %v1464
        %v1475 = vpack.c.bf16 %v1465, %v1465
        %v1476 = vpack.c.bf16 %v1466, %v1466
        %v1477 = vpack.c.bf16 %v1467, %v1467
        %v1478 = vpack.c.bf16 %v1468, %v1468
        %v1479 = vpack.c.bf16 %v1469, %v1469
        %v1480 = vpack.c.bf16 %v1470, %v1470
        %v1481 = vpack.c.bf16 %v1471, %v1471
        %v1482 = vpack.c.bf16 %v1472, %v1472
        %v1493 = vunpack.c.l.b16 %v1473
        %v1494 = vunpack.c.l.b16 %v1474
        %v1495 = vunpack.c.l.b16 %v1475
        %v1496 = vunpack.c.l.b16 %v1476
        %v1497 = vunpack.c.l.b16 %v1477
        %v1498 = vunpack.c.l.b16 %v1478
        %v1499 = vunpack.c.l.b16 %v1479
        %v1500 = vunpack.c.l.b16 %v1480
        %v1501 = vunpack.c.l.b16 %v1481
        %v1502 = vunpack.c.l.b16 %v1482
        %v1503 = vpack.c.b16 %v1493, %v1493
        %v1504 = vpack.c.b16 %v1494, %v1494
        %v1505 = vpack.c.b16 %v1495, %v1495
        %v1506 = vpack.c.b16 %v1496, %v1496
        %v1507 = vpack.c.b16 %v1497, %v1497
        %v1508 = vpack.c.b16 %v1498, %v1498
        %v1509 = vpack.c.b16 %v1499, %v1499
        %v1510 = vpack.c.b16 %v1500, %v1500
        %v1511 = vpack.c.b16 %v1501, %v1501
        %v1512 = vpack.c.b16 %v1502, %v1502
        %v1514 = vshrl.u32 %v1503, 16
        %v1516 = vrot.slane %v1514, 7
        %v1517 = vshll.u32 %v1503, 16
        %v1519 = vor.u32 %v1516, %v1517
        %v1520 = vrot.slane %v1516, 4
        %v1522 = vshrl.u32 %v1504, 16
        %v1524 = vrot.slane %v1522, 7
        %v1525 = vshll.u32 %v1504, 16
        %v1527 = vor.u32 %v1524, %v1525
        %v1528 = vrot.slane %v1524, 4
        %v1530 = vshrl.u32 %v1505, 16
        %v1532 = vrot.slane %v1530, 7
        %v1533 = vshll.u32 %v1505, 16
        %v1535 = vor.u32 %v1532, %v1533
        %v1536 = vrot.slane %v1532, 4
        %v1538 = vshrl.u32 %v1506, 16
        %v1540 = vrot.slane %v1538, 7
        %v1541 = vshll.u32 %v1506, 16
        %v1543 = vor.u32 %v1540, %v1541
        %v1544 = vrot.slane %v1540, 4
        %v1546 = vshrl.u32 %v1507, 16
        %v1548 = vrot.slane %v1546, 7
        %v1549 = vshll.u32 %v1507, 16
        %v1551 = vor.u32 %v1548, %v1549
        %v1552 = vrot.slane %v1548, 4
        %v1554 = vshrl.u32 %v1508, 16
        %v1556 = vrot.slane %v1554, 7
        %v1557 = vshll.u32 %v1508, 16
        %v1559 = vor.u32 %v1556, %v1557
        %v1560 = vrot.slane %v1556, 4
        %v1562 = vshrl.u32 %v1509, 16
        %v1564 = vrot.slane %v1562, 7
        %v1565 = vshll.u32 %v1509, 16
        %v1567 = vor.u32 %v1564, %v1565
        %v1568 = vrot.slane %v1564, 4
        %v1570 = vshrl.u32 %v1510, 16
        %v1572 = vrot.slane %v1570, 7
        %v1573 = vshll.u32 %v1510, 16
        %v1575 = vor.u32 %v1572, %v1573
        %v1576 = vrot.slane %v1572, 4
        %v1578 = vshrl.u32 %v1511, 16
        %v1580 = vrot.slane %v1578, 7
        %v1581 = vshll.u32 %v1511, 16
        %v1583 = vor.u32 %v1580, %v1581
        %v1584 = vrot.slane %v1580, 4
        %v1586 = vshrl.u32 %v1512, 16
        %v1588 = vrot.slane %v1586, 7
        %v1589 = vshll.u32 %v1512, 16
        %v1591 = vor.u32 %v1588, %v1589
        %v1592 = vrot.slane %v1588, 4
        %vm1613 = vcmask 60416
        %vm1614 = vsmask.f32 7938
        %vm1615 = vmand %vm1613, %vm1614
        %v1616 = vld [vmem:[#allocation2] sm:$0xf]
        %v1617 = vsel %vm1615, %v1519, %v1616
        %1618 = vst [vmem:[#allocation2] sm:$0xf] %v1617
        %vm1619 = vcmask 57344
        %vm1620 = vsmask.f32 256
        %vm1621 = vmand %vm1619, %vm1620
        %v1622 = vld [vmem:[#allocation2 + $0x4] sm:$0x1]
        %v1623 = vsel %vm1621, %v1520, %v1622
        %1624 = vst [vmem:[#allocation2 + $0x4] sm:$0x1] %v1623
        %v1625 = vld [vmem:[#allocation2 + $0x8] sm:$0xf]
        %v1626 = vsel %vm1615, %v1527, %v1625
        %1627 = vst [vmem:[#allocation2 + $0x8] sm:$0xf] %v1626
        %v1628 = vld [vmem:[#allocation2 + $0xc] sm:$0x1]
        %v1629 = vsel %vm1621, %v1528, %v1628
        %1630 = vst [vmem:[#allocation2 + $0xc] sm:$0x1] %v1629
        %v1631 = vld [vmem:[#allocation2 + $0x10] sm:$0xf]
        %v1632 = vsel %vm1615, %v1535, %v1631
        %1633 = vst [vmem:[#allocation2 + $0x10] sm:$0xf] %v1632
        %v1634 = vld [vmem:[#allocation2 + $0x14] sm:$0x1]
        %v1635 = vsel %vm1621, %v1536, %v1634
        %1636 = vst [vmem:[#allocation2 + $0x14] sm:$0x1] %v1635
        %v1637 = vld [vmem:[#allocation2 + $0x18] sm:$0xf]
        %v1638 = vsel %vm1615, %v1543, %v1637
        %1639 = vst [vmem:[#allocation2 + $0x18] sm:$0xf] %v1638
        %v1640 = vld [vmem:[#allocation2 + $0x1c] sm:$0x1]
        %v1641 = vsel %vm1621, %v1544, %v1640
        %1642 = vst [vmem:[#allocation2 + $0x1c] sm:$0x1] %v1641
        %v1643 = vld [vmem:[#allocation2 + $0x20] sm:$0xf]
        %v1644 = vsel %vm1615, %v1551, %v1643
        %1645 = vst [vmem:[#allocation2 + $0x20] sm:$0xf] %v1644
        %v1646 = vld [vmem:[#allocation2 + $0x24] sm:$0x1]
        %v1647 = vsel %vm1621, %v1552, %v1646
        %1648 = vst [vmem:[#allocation2 + $0x24] sm:$0x1] %v1647
        %v1649 = vld [vmem:[#allocation2 + $0x28] sm:$0xf]
        %v1650 = vsel %vm1615, %v1559, %v1649
        %1651 = vst [vmem:[#allocation2 + $0x28] sm:$0xf] %v1650
        %v1652 = vld [vmem:[#allocation2 + $0x2c] sm:$0x1]
        %v1653 = vsel %vm1621, %v1560, %v1652
        %1654 = vst [vmem:[#allocation2 + $0x2c] sm:$0x1] %v1653
        %v1655 = vld [vmem:[#allocation2 + $0x30] sm:$0xf]
        %v1656 = vsel %vm1615, %v1567, %v1655
        %1657 = vst [vmem:[#allocation2 + $0x30] sm:$0xf] %v1656
        %v1658 = vld [vmem:[#allocation2 + $0x34] sm:$0x1]
        %v1659 = vsel %vm1621, %v1568, %v1658
        %1660 = vst [vmem:[#allocation2 + $0x34] sm:$0x1] %v1659
        %v1661 = vld [vmem:[#allocation2 + $0x38] sm:$0xf]
        %v1662 = vsel %vm1615, %v1575, %v1661
        %1663 = vst [vmem:[#allocation2 + $0x38] sm:$0xf] %v1662
        %v1664 = vld [vmem:[#allocation2 + $0x3c] sm:$0x1]
        %v1665 = vsel %vm1621, %v1576, %v1664
        %1666 = vst [vmem:[#allocation2 + $0x3c] sm:$0x1] %v1665
        %v1667 = vld [vmem:[#allocation2 + $0x40] sm:$0xf]
        %v1668 = vsel %vm1615, %v1583, %v1667
        %1669 = vst [vmem:[#allocation2 + $0x40] sm:$0xf] %v1668
        %v1670 = vld [vmem:[#allocation2 + $0x44] sm:$0x1]
        %v1671 = vsel %vm1621, %v1584, %v1670
        %1672 = vst [vmem:[#allocation2 + $0x44] sm:$0x1] %v1671
        %v1673 = vld [vmem:[#allocation2 + $0x48] sm:$0xf]
        %v1674 = vsel %vm1615, %v1591, %v1673
        %1675 = vst [vmem:[#allocation2 + $0x48] sm:$0xf] %v1674
        %v1676 = vld [vmem:[#allocation2 + $0x4c] sm:$0x1]
        %v1677 = vsel %vm1621, %v1592, %v1676
        %1678 = vst [vmem:[#allocation2 + $0x4c] sm:$0x1] %v1677
        %v1679 = vld [vmem:[#allocation2] sm:$0x1]
        %v1680 = vsel %vm1621, 0, %v1679
        %1681 = vst [vmem:[#allocation2] sm:$0x1] %v1680
        %v1682 = vld [vmem:[#allocation2 + $0x8] sm:$0x1]
        %v1683 = vsel %vm1621, 0, %v1682
        %1684 = vst [vmem:[#allocation2 + $0x8] sm:$0x1] %v1683
        %v1685 = vld [vmem:[#allocation2 + $0x10] sm:$0x1]
        %v1686 = vsel %vm1621, 0, %v1685
        %1687 = vst [vmem:[#allocation2 + $0x10] sm:$0x1] %v1686
        %v1688 = vld [vmem:[#allocation2 + $0x18] sm:$0x1]
        %v1689 = vsel %vm1621, 0, %v1688
        %1690 = vst [vmem:[#allocation2 + $0x18] sm:$0x1] %v1689
        %v1691 = vld [vmem:[#allocation2 + $0x20] sm:$0x1]
        %v1692 = vsel %vm1621, 0, %v1691
        %1693 = vst [vmem:[#allocation2 + $0x20] sm:$0x1] %v1692
        %v1694 = vld [vmem:[#allocation2 + $0x28] sm:$0x1]
        %v1695 = vsel %vm1621, 0, %v1694
        %1696 = vst [vmem:[#allocation2 + $0x28] sm:$0x1] %v1695
        %v1697 = vld [vmem:[#allocation2 + $0x30] sm:$0x1]
        %v1698 = vsel %vm1621, 0, %v1697
        %1699 = vst [vmem:[#allocation2 + $0x30] sm:$0x1] %v1698
        %v1700 = vld [vmem:[#allocation2 + $0x38] sm:$0x1]
        %v1701 = vsel %vm1621, 0, %v1700
        %1702 = vst [vmem:[#allocation2 + $0x38] sm:$0x1] %v1701
        %v1703 = vld [vmem:[#allocation2 + $0x40] sm:$0x1]
        %v1704 = vsel %vm1621, 0, %v1703
        %1705 = vst [vmem:[#allocation2 + $0x40] sm:$0x1] %v1704
        %v1706 = vld [vmem:[#allocation2 + $0x48] sm:$0x1]
        %v1707 = vsel %vm1621, 0, %v1706
        %1708 = vst [vmem:[#allocation2 + $0x48] sm:$0x1] %v1707
        %vm1709 = vmand %vm1619, %vm1614
        %v1710 = vld [vmem:[#allocation2 + $0x4] sm:$0x1]
        %v1711 = vsel %vm1709, 0, %v1710
        %1712 = vst [vmem:[#allocation2 + $0x4] sm:$0x1] %v1711
        %v1713 = vld [vmem:[#allocation2 + $0xc] sm:$0x1]
        %v1714 = vsel %vm1709, 0, %v1713
        %1715 = vst [vmem:[#allocation2 + $0xc] sm:$0x1] %v1714
        %v1716 = vld [vmem:[#allocation2 + $0x14] sm:$0x1]
        %v1717 = vsel %vm1709, 0, %v1716
        %1718 = vst [vmem:[#allocation2 + $0x14] sm:$0x1] %v1717
        %v1719 = vld [vmem:[#allocation2 + $0x1c] sm:$0x1]
        %v1720 = vsel %vm1709, 0, %v1719
        %1721 = vst [vmem:[#allocation2 + $0x1c] sm:$0x1] %v1720
        %v1722 = vld [vmem:[#allocation2 + $0x24] sm:$0x1]
        %v1723 = vsel %vm1709, 0, %v1722
        %1724 = vst [vmem:[#allocation2 + $0x24] sm:$0x1] %v1723
        %v1725 = vld [vmem:[#allocation2 + $0x2c] sm:$0x1]
        %v1726 = vsel %vm1709, 0, %v1725
        %1727 = vst [vmem:[#allocation2 + $0x2c] sm:$0x1] %v1726
        %v1728 = vld [vmem:[#allocation2 + $0x34] sm:$0x1]
        %v1729 = vsel %vm1709, 0, %v1728
        %1730 = vst [vmem:[#allocation2 + $0x34] sm:$0x1] %v1729
        %v1731 = vld [vmem:[#allocation2 + $0x3c] sm:$0x1]
        %v1732 = vsel %vm1709, 0, %v1731
        %1733 = vst [vmem:[#allocation2 + $0x3c] sm:$0x1] %v1732
        %v1734 = vld [vmem:[#allocation2 + $0x44] sm:$0x1]
        %v1735 = vsel %vm1709, 0, %v1734
        %1736 = vst [vmem:[#allocation2 + $0x44] sm:$0x1] %v1735
        %v1737 = vld [vmem:[#allocation2 + $0x4c] sm:$0x1]
        %v1738 = vsel %vm1709, 0, %v1737
        %1739 = vst [vmem:[#allocation2 + $0x4c] sm:$0x1] %v1738
        %p1740 = scmp.eq.s32.totalorder %s24, 0
        // Predicated region
        $region41: #{double_conv_block.1} parent=39 // pred_check
          %p1741 = pneg %p1740
        $region42: #{double_conv_block.1} parent=39 // pred_check_branch
          %1743 = sbr.rel (%p1741) target = $region44
        $region43: #{double_conv_block.1} parent=39 // pred_region
          %vm1744 = vcmask 60416
          %1745 = vst.msk [vmem:[#allocation2] sm:$0xf] %vm1744, 0
          %vm1746 = vcmask 57344
          %1747 = vst.msk [vmem:[#allocation2 + $0x4] sm:$0x1] %vm1746, 0
          %s1748 = scalar_lea.vmem [#allocation2], 72
          %1749 = vst.msk [vmem:[%s1748] sm:$0xf] %vm1744, 0
          %1750 = vst.msk [vmem:[%s1748 + $0x4] sm:$0x1] %vm1746, 0
        $region44: #{double_conv_block.1} parent=39 // pred_fallthru
          _
        %v1751 = vld [vmem:[#allocation2] sm:$0xf]
        %v1752 = vld [vmem:[#allocation2 + $0x8] sm:$0xf]
        %v1753 = vld [vmem:[#allocation2 + $0x10] sm:$0xf]
        %v1754 = vld [vmem:[#allocation2 + $0x18] sm:$0xf]
        %v1755 = vld [vmem:[#allocation2 + $0x20] sm:$0xf]
        %v1756 = vld [vmem:[#allocation2 + $0x28] sm:$0xf]
        %v1757 = vld [vmem:[#allocation2 + $0x30] sm:$0xf]
        %v1758 = vld [vmem:[#allocation2 + $0x38] sm:$0xf]
        %v1759 = vld [vmem:[#allocation2 + $0x4] sm:$0x1]
        %v1760 = vld [vmem:[#allocation2 + $0xc] sm:$0x1]
        %v1761 = vld [vmem:[#allocation2 + $0x14] sm:$0x1]
        %v1762 = vld [vmem:[#allocation2 + $0x1c] sm:$0x1]
        %v1763 = vld [vmem:[#allocation2 + $0x24] sm:$0x1]
        %v1764 = vld [vmem:[#allocation2 + $0x2c] sm:$0x1]
        %v1765 = vld [vmem:[#allocation2 + $0x34] sm:$0x1]
        %v1766 = vld [vmem:[#allocation2 + $0x3c] sm:$0x1]
        %v1767 = vld [vmem:[#allocation2] sm:$0xe]
        %v1768 = vld [vmem:[#allocation2 + $0x8] sm:$0xe]
        %v1769 = vld [vmem:[#allocation2 + $0x10] sm:$0xe]
        %v1770 = vld [vmem:[#allocation2 + $0x18] sm:$0xe]
        %v1771 = vld [vmem:[#allocation2 + $0x20] sm:$0xe]
        %v1772 = vld [vmem:[#allocation2 + $0x28] sm:$0xe]
        %v1773 = vld [vmem:[#allocation2 + $0x30] sm:$0xe]
        %v1774 = vld [vmem:[#allocation2 + $0x38] sm:$0xe]
        %v1791 = vunpack.c.l.b16 %v1751
        %v1792 = vunpack.c.l.b16 %v1759
        %v1793 = vunpack.c.l.b16 %v1752
        %v1794 = vunpack.c.l.b16 %v1760
        %v1795 = vunpack.c.l.b16 %v1753
        %v1796 = vunpack.c.l.b16 %v1761
        %v1797 = vunpack.c.l.b16 %v1754
        %v1798 = vunpack.c.l.b16 %v1762
        %v1799 = vunpack.c.l.b16 %v1755
        %v1800 = vunpack.c.l.b16 %v1763
        %v1801 = vunpack.c.l.b16 %v1756
        %v1802 = vunpack.c.l.b16 %v1764
        %v1803 = vunpack.c.l.b16 %v1757
        %v1804 = vunpack.c.l.b16 %v1765
        %v1805 = vunpack.c.l.b16 %v1758
        %v1806 = vunpack.c.l.b16 %v1766
        %v1807 = vpack.c.b16 %v1792, %v1791
        %v1808 = vpack.c.b16 %v1794, %v1793
        %v1809 = vpack.c.b16 %v1796, %v1795
        %v1810 = vpack.c.b16 %v1798, %v1797
        %v1811 = vpack.c.b16 %v1800, %v1799
        %v1812 = vpack.c.b16 %v1802, %v1801
        %v1813 = vpack.c.b16 %v1804, %v1803
        %v1814 = vpack.c.b16 %v1806, %v1805
        %v1816 = vshrl.u32 %v1807, 16
        %v1818 = vshll.u32 %v1807, 16
        %v1820 = vrot.slane %v1818, 1
        %v1821 = vor.u32 %v1816, %v1820
        %v1823 = vshrl.u32 %v1808, 16
        %v1825 = vshll.u32 %v1808, 16
        %v1827 = vrot.slane %v1825, 1
        %v1828 = vor.u32 %v1823, %v1827
        %v1830 = vshrl.u32 %v1809, 16
        %v1832 = vshll.u32 %v1809, 16
        %v1834 = vrot.slane %v1832, 1
        %v1835 = vor.u32 %v1830, %v1834
        %v1837 = vshrl.u32 %v1810, 16
        %v1839 = vshll.u32 %v1810, 16
        %v1841 = vrot.slane %v1839, 1
        %v1842 = vor.u32 %v1837, %v1841
        %v1844 = vshrl.u32 %v1811, 16
        %v1846 = vshll.u32 %v1811, 16
        %v1848 = vrot.slane %v1846, 1
        %v1849 = vor.u32 %v1844, %v1848
        %v1851 = vshrl.u32 %v1812, 16
        %v1853 = vshll.u32 %v1812, 16
        %v1855 = vrot.slane %v1853, 1
        %v1856 = vor.u32 %v1851, %v1855
        %v1858 = vshrl.u32 %v1813, 16
        %v1860 = vshll.u32 %v1813, 16
        %v1862 = vrot.slane %v1860, 1
        %v1863 = vor.u32 %v1858, %v1862
        %v1865 = vshrl.u32 %v1814, 16
        %v1867 = vshll.u32 %v1814, 16
        %v1869 = vrot.slane %v1867, 1
        %v1870 = vor.u32 %v1865, %v1869
        %1871 = vrot.lane.b32.xlu0 %v1821, 8
        %v1872 = vpop.permute.xlu0 %1871
        %1873 = vrot.lane.b32.xlu0 %v1828, 8
        %v1874 = vpop.permute.xlu0 %1873
        %1875 = vrot.lane.b32.xlu0 %v1835, 8
        %v1876 = vpop.permute.xlu0 %1875
        %1877 = vrot.lane.b32.xlu0 %v1842, 8
        %v1878 = vpop.permute.xlu0 %1877
        %1879 = vrot.lane.b32.xlu0 %v1849, 8
        %v1880 = vpop.permute.xlu0 %1879
        %1881 = vrot.lane.b32.xlu0 %v1856, 8
        %v1882 = vpop.permute.xlu0 %1881
        %1883 = vrot.lane.b32.xlu0 %v1863, 8
        %v1884 = vpop.permute.xlu0 %1883
        %1885 = vrot.lane.b32.xlu0 %v1870, 8
        %v1886 = vpop.permute.xlu0 %1885
        %v1895 = vunpack.c.l.b16 %v1767
        %v1896 = vunpack.c.l.b16 %v1768
        %v1897 = vunpack.c.l.b16 %v1769
        %v1898 = vunpack.c.l.b16 %v1770
        %v1899 = vunpack.c.l.b16 %v1771
        %v1900 = vunpack.c.l.b16 %v1772
        %v1901 = vunpack.c.l.b16 %v1773
        %v1902 = vunpack.c.l.b16 %v1774
        %v1903 = vpack.c.b16 %v1792, %v1895
        %v1904 = vpack.c.b16 %v1794, %v1896
        %v1905 = vpack.c.b16 %v1796, %v1897
        %v1906 = vpack.c.b16 %v1798, %v1898
        %v1907 = vpack.c.b16 %v1800, %v1899
        %v1908 = vpack.c.b16 %v1802, %v1900
        %v1909 = vpack.c.b16 %v1804, %v1901
        %v1910 = vpack.c.b16 %v1806, %v1902
        %v1911 = vrot.slane %v1903, 1
        %v1912 = vrot.slane %v1904, 1
        %v1913 = vrot.slane %v1905, 1
        %v1914 = vrot.slane %v1906, 1
        %v1915 = vrot.slane %v1907, 1
        %v1916 = vrot.slane %v1908, 1
        %v1917 = vrot.slane %v1909, 1
        %v1918 = vrot.slane %v1910, 1
        %1919 = vrot.lane.b32.xlu0 %v1911, 16
        %v1920 = vpop.permute.xlu0 %1919
        %1921 = vrot.lane.b32.xlu0 %v1912, 16
        %v1922 = vpop.permute.xlu0 %1921
        %1923 = vrot.lane.b32.xlu0 %v1913, 16
        %v1924 = vpop.permute.xlu0 %1923
        %1925 = vrot.lane.b32.xlu0 %v1914, 16
        %v1926 = vpop.permute.xlu0 %1925
        %1927 = vrot.lane.b32.xlu0 %v1915, 16
        %v1928 = vpop.permute.xlu0 %1927
        %1929 = vrot.lane.b32.xlu0 %v1916, 16
        %v1930 = vpop.permute.xlu0 %1929
        %1931 = vrot.lane.b32.xlu0 %v1917, 16
        %v1932 = vpop.permute.xlu0 %1931
        %1933 = vrot.lane.b32.xlu0 %v1918, 16
        %v1934 = vpop.permute.xlu0 %1933
        %v1937 = vsel %vm498, %v1751, %v1872
        %v1940 = vsel %vm498, %v1752, %v1874
        %v1943 = vsel %vm498, %v1753, %v1876
        %v1946 = vsel %vm498, %v1754, %v1878
        %v1949 = vsel %vm498, %v1755, %v1880
        %v1952 = vsel %vm498, %v1756, %v1882
        %v1955 = vsel %vm498, %v1757, %v1884
        %v1958 = vsel %vm498, %v1758, %v1886
        %vm1959 = vcmask 130048
        %v1961 = vsel %vm1959, %v1937, %v1920
        %v1963 = vsel %vm1959, %v1940, %v1922
        %v1965 = vsel %vm1959, %v1943, %v1924
        %v1967 = vsel %vm1959, %v1946, %v1926
        %v1969 = vsel %vm1959, %v1949, %v1928
        %v1971 = vsel %vm1959, %v1952, %v1930
        %v1973 = vsel %vm1959, %v1955, %v1932
        %v1975 = vsel %vm1959, %v1958, %v1934
        %v1976 = vld [vmem:[%s3] sm:$0xf]
        %v1977 = vld [vmem:[%s3 + $0x4] sm:$0xf]
        %v1978 = vld [vmem:[%s3 + $0x8] sm:$0xf]
        %s1979 = scalar_lea.vmem [#allocation2], 8
        %v1980 = vld [vmem:[%s1979] sm:$0xf]
        %v1981 = vld [vmem:[%s1979 + $0x8] sm:$0xf]
        %v1982 = vld [vmem:[%s1979 + $0x10] sm:$0xf]
        %v1983 = vld [vmem:[%s1979 + $0x18] sm:$0xf]
        %v1984 = vld [vmem:[%s1979 + $0x20] sm:$0xf]
        %v1985 = vld [vmem:[%s1979 + $0x28] sm:$0xf]
        %v1986 = vld [vmem:[%s1979 + $0x30] sm:$0xf]
        %v1987 = vld [vmem:[%s1979 + $0x38] sm:$0xf]
        %v1988 = vld [vmem:[%s1979 + $0x4] sm:$0x1]
        %v1989 = vld [vmem:[%s1979 + $0xc] sm:$0x1]
        %v1990 = vld [vmem:[%s1979 + $0x14] sm:$0x1]
        %v1991 = vld [vmem:[%s1979 + $0x1c] sm:$0x1]
        %v1992 = vld [vmem:[%s1979 + $0x24] sm:$0x1]
        %v1993 = vld [vmem:[%s1979 + $0x2c] sm:$0x1]
        %v1994 = vld [vmem:[%s1979 + $0x34] sm:$0x1]
        %v1995 = vld [vmem:[%s1979 + $0x3c] sm:$0x1]
        %v1996 = vld [vmem:[%s1979] sm:$0xe]
        %v1997 = vld [vmem:[%s1979 + $0x8] sm:$0xe]
        %v1998 = vld [vmem:[%s1979 + $0x10] sm:$0xe]
        %v1999 = vld [vmem:[%s1979 + $0x18] sm:$0xe]
        %v2000 = vld [vmem:[%s1979 + $0x20] sm:$0xe]
        %v2001 = vld [vmem:[%s1979 + $0x28] sm:$0xe]
        %v2002 = vld [vmem:[%s1979 + $0x30] sm:$0xe]
        %v2003 = vld [vmem:[%s1979 + $0x38] sm:$0xe]
        %v2020 = vunpack.c.l.b16 %v1980
        %v2021 = vunpack.c.l.b16 %v1988
        %v2022 = vunpack.c.l.b16 %v1981
        %v2023 = vunpack.c.l.b16 %v1989
        %v2024 = vunpack.c.l.b16 %v1982
        %v2025 = vunpack.c.l.b16 %v1990
        %v2026 = vunpack.c.l.b16 %v1983
        %v2027 = vunpack.c.l.b16 %v1991
        %v2028 = vunpack.c.l.b16 %v1984
        %v2029 = vunpack.c.l.b16 %v1992
        %v2030 = vunpack.c.l.b16 %v1985
        %v2031 = vunpack.c.l.b16 %v1993
        %v2032 = vunpack.c.l.b16 %v1986
        %v2033 = vunpack.c.l.b16 %v1994
        %v2034 = vunpack.c.l.b16 %v1987
        %v2035 = vunpack.c.l.b16 %v1995
        %v2036 = vpack.c.b16 %v2021, %v2020
        %v2037 = vpack.c.b16 %v2023, %v2022
        %v2038 = vpack.c.b16 %v2025, %v2024
        %v2039 = vpack.c.b16 %v2027, %v2026
        %v2040 = vpack.c.b16 %v2029, %v2028
        %v2041 = vpack.c.b16 %v2031, %v2030
        %v2042 = vpack.c.b16 %v2033, %v2032
        %v2043 = vpack.c.b16 %v2035, %v2034
        %v2045 = vshrl.u32 %v2036, 16
        %v2047 = vshll.u32 %v2036, 16
        %v2049 = vrot.slane %v2047, 1
        %v2050 = vor.u32 %v2045, %v2049
        %v2052 = vshrl.u32 %v2037, 16
        %v2054 = vshll.u32 %v2037, 16
        %v2056 = vrot.slane %v2054, 1
        %v2057 = vor.u32 %v2052, %v2056
        %v2059 = vshrl.u32 %v2038, 16
        %v2061 = vshll.u32 %v2038, 16
        %v2063 = vrot.slane %v2061, 1
        %v2064 = vor.u32 %v2059, %v2063
        %v2066 = vshrl.u32 %v2039, 16
        %v2068 = vshll.u32 %v2039, 16
        %v2070 = vrot.slane %v2068, 1
        %v2071 = vor.u32 %v2066, %v2070
        %v2073 = vshrl.u32 %v2040, 16
        %v2075 = vshll.u32 %v2040, 16
        %v2077 = vrot.slane %v2075, 1
        %v2078 = vor.u32 %v2073, %v2077
        %v2080 = vshrl.u32 %v2041, 16
        %v2082 = vshll.u32 %v2041, 16
        %v2084 = vrot.slane %v2082, 1
        %v2085 = vor.u32 %v2080, %v2084
        %v2087 = vshrl.u32 %v2042, 16
        %v2089 = vshll.u32 %v2042, 16
        %v2091 = vrot.slane %v2089, 1
        %v2092 = vor.u32 %v2087, %v2091
        %v2094 = vshrl.u32 %v2043, 16
        %v2096 = vshll.u32 %v2043, 16
        %v2098 = vrot.slane %v2096, 1
        %v2099 = vor.u32 %v2094, %v2098
        %2100 = vrot.lane.b32.xlu0 %v2050, 8
        %v2101 = vpop.permute.xlu0 %2100
        %2102 = vrot.lane.b32.xlu0 %v2057, 8
        %v2103 = vpop.permute.xlu0 %2102
        %2104 = vrot.lane.b32.xlu0 %v2064, 8
        %v2105 = vpop.permute.xlu0 %2104
        %2106 = vrot.lane.b32.xlu0 %v2071, 8
        %v2107 = vpop.permute.xlu0 %2106
        %2108 = vrot.lane.b32.xlu0 %v2078, 8
        %v2109 = vpop.permute.xlu0 %2108
        %2110 = vrot.lane.b32.xlu0 %v2085, 8
        %v2111 = vpop.permute.xlu0 %2110
        %2112 = vrot.lane.b32.xlu0 %v2092, 8
        %v2113 = vpop.permute.xlu0 %2112
        %2114 = vrot.lane.b32.xlu0 %v2099, 8
        %v2115 = vpop.permute.xlu0 %2114
        %v2124 = vunpack.c.l.b16 %v1996
        %v2125 = vunpack.c.l.b16 %v1997
        %v2126 = vunpack.c.l.b16 %v1998
        %v2127 = vunpack.c.l.b16 %v1999
        %v2128 = vunpack.c.l.b16 %v2000
        %v2129 = vunpack.c.l.b16 %v2001
        %v2130 = vunpack.c.l.b16 %v2002
        %v2131 = vunpack.c.l.b16 %v2003
        %v2132 = vpack.c.b16 %v2021, %v2124
        %v2133 = vpack.c.b16 %v2023, %v2125
        %v2134 = vpack.c.b16 %v2025, %v2126
        %v2135 = vpack.c.b16 %v2027, %v2127
        %v2136 = vpack.c.b16 %v2029, %v2128
        %v2137 = vpack.c.b16 %v2031, %v2129
        %v2138 = vpack.c.b16 %v2033, %v2130
        %v2139 = vpack.c.b16 %v2035, %v2131
        %v2140 = vrot.slane %v2132, 1
        %v2141 = vrot.slane %v2133, 1
        %v2142 = vrot.slane %v2134, 1
        %v2143 = vrot.slane %v2135, 1
        %v2144 = vrot.slane %v2136, 1
        %v2145 = vrot.slane %v2137, 1
        %v2146 = vrot.slane %v2138, 1
        %v2147 = vrot.slane %v2139, 1
        %2148 = vrot.lane.b32.xlu0 %v2140, 16
        %v2149 = vpop.permute.xlu0 %2148
        %2150 = vrot.lane.b32.xlu0 %v2141, 16
        %v2151 = vpop.permute.xlu0 %2150
        %2152 = vrot.lane.b32.xlu0 %v2142, 16
        %v2153 = vpop.permute.xlu0 %2152
        %2154 = vrot.lane.b32.xlu0 %v2143, 16
        %v2155 = vpop.permute.xlu0 %2154
        %2156 = vrot.lane.b32.xlu0 %v2144, 16
        %v2157 = vpop.permute.xlu0 %2156
        %2158 = vrot.lane.b32.xlu0 %v2145, 16
        %v2159 = vpop.permute.xlu0 %2158
        %2160 = vrot.lane.b32.xlu0 %v2146, 16
        %v2161 = vpop.permute.xlu0 %2160
        %2162 = vrot.lane.b32.xlu0 %v2147, 16
        %v2163 = vpop.permute.xlu0 %2162
        %v2166 = vsel %vm498, %v1980, %v2101
        %v2169 = vsel %vm498, %v1981, %v2103
        %v2172 = vsel %vm498, %v1982, %v2105
        %v2175 = vsel %vm498, %v1983, %v2107
        %v2178 = vsel %vm498, %v1984, %v2109
        %v2181 = vsel %vm498, %v1985, %v2111
        %v2184 = vsel %vm498, %v1986, %v2113
        %v2187 = vsel %vm498, %v1987, %v2115
        %v2189 = vsel %vm1959, %v2166, %v2149
        %v2191 = vsel %vm1959, %v2169, %v2151
        %v2193 = vsel %vm1959, %v2172, %v2153
        %v2195 = vsel %vm1959, %v2175, %v2155
        %v2197 = vsel %vm1959, %v2178, %v2157
        %v2199 = vsel %vm1959, %v2181, %v2159
        %v2201 = vsel %vm1959, %v2184, %v2161
        %v2203 = vsel %vm1959, %v2187, %v2163
        %s2204 = scalar_lea.vmem %s3, 12
        %v2205 = vld [vmem:[%s2204] sm:$0xf]
        %v2206 = vld [vmem:[%s2204 + $0x4] sm:$0xf]
        %v2207 = vld [vmem:[%s2204 + $0x8] sm:$0xf]
        %v2216 = vunpack.c.l.b16 %v2189
        %v2217 = vunpack.c.l.b16 %v2191
        %v2218 = vunpack.c.l.b16 %v2193
        %v2219 = vunpack.c.l.b16 %v2195
        %v2220 = vunpack.c.l.b16 %v2197
        %v2221 = vunpack.c.l.b16 %v2199
        %v2222 = vunpack.c.l.b16 %v2201
        %v2223 = vunpack.c.l.b16 %v2203
        %v2224 = vpack.c.b16 %v2217, %v2216
        %v2225 = vpack.c.b16 %v2219, %v2218
        %v2226 = vpack.c.b16 %v2221, %v2220
        %v2227 = vpack.c.b16 %v2223, %v2222
        %v2231 = vunpack.c.l.b16 %v2205
        %v2232 = vunpack.c.l.b16 %v2206
        %v2233 = vunpack.c.l.b16 %v2207
        %v2234 = vpack.c.b16 %v2232, %v2231
        %v2235 = vpack.c.b16 %v2233, %v2233
        %vm2237 = vcmask 195584
        %v2239 = vsel %vm2237, %v2224, 0
        %v2242 = vsel %vm2237, %v2225, 0
        %v2245 = vsel %vm2237, %v2226, 0
        %v2248 = vsel %vm2237, %v2227, 0
        %vm2250 = vcmask 1043456
        %v2252 = vsel %vm2250, %v2235, 0
        %2254 = vmatprep.subr.bf16.mxu0 0
        %2255 = vmatpush1.bf16.msra.mxu0 0
        %2256 = vmatprep.subr.bf16.mxu0 0
        %2257 = vmatpush1.bf16.msra.mxu0 0
        %2258 = vmatprep.subr.bf16.mxu0 0
        %2259 = vmatpush1.bf16.msra.mxu0 0
        %2260 = vmatprep.subr.bf16.mxu0 0
        %2261 = vmatpush1.bf16.msra.mxu0 0
        %2262 = vmatprep.subr.bf16.mxu0 0
        %2263 = vmatpush1.bf16.msra.mxu0 0
        %2264 = vmatprep.subr.bf16.mxu0 0
        %2265 = vmatpush1.bf16.msra.mxu0 0
        %2266 = vmatprep.subr.bf16.mxu0 0
        %2267 = vmatpush1.bf16.msra.mxu0 %v2252
        %2268 = vmatprep.subr.bf16.mxu0 0
        %2269 = vmatpush1.bf16.msra.mxu0 %v2234
        %2270 = vmatprep.subr.bf16.mxu0 0
        %2271 = vmatpush2.bf16.msra.mxu0 0
        %2272 = vmatprep.subr.bf16.mxu0 0
        %2273 = vmatpush2.bf16.msra.mxu0 0
        %2274 = vmatprep.subr.bf16.mxu0 0
        %2275 = vmatpush2.bf16.msra.mxu0 0
        %2276 = vmatprep.subr.bf16.mxu0 0
        %2277 = vmatpush2.bf16.msra.mxu0 0
        %2278 = vmatprep.subr.bf16.mxu0 0
        %2279 = vmatpush2.bf16.msra.mxu0 0
        %2280 = vmatprep.subr.bf16.mxu0 0
        %2281 = vmatpush2.bf16.msra.mxu0 0
        %2282 = vmatprep.subr.bf16.mxu0 0
        %2283 = vmatpush2.bf16.msra.mxu0 0
        %2284 = vmatprep.subr.bf16.mxu0 0
        %2285 = vmatpush2.bf16.msra.mxu0 0
        %2286 = vmatprep.mubr.bf16.mxu0 0
        %2287 = vmatmul.mubr.bf16.gmra.mxu0 %v2239
        %v2288 = vpop.f32.mrf.mxu0
        %v2289 = vadd.f32 0.0, %v2288
        %v2290 = vpop.f32.mrf.mxu0
        %v2291 = vpop.f32.mrf.mxu0
        %v2292 = vadd.f32 0.0, %v2291
        %v2293 = vpop.f32.mrf.mxu0
        %2294 = vmatprep.mubr.bf16.mxu0 0
        %2295 = vmatmul.mubr.bf16.gmra.mxu0 %v2242
        %v2296 = vpop.f32.mrf.mxu0
        %v2297 = vadd.f32 0.0, %v2296
        %v2298 = vpop.f32.mrf.mxu0
        %v2299 = vpop.f32.mrf.mxu0
        %v2300 = vadd.f32 0.0, %v2299
        %v2301 = vpop.f32.mrf.mxu0
        %2302 = vmatprep.mubr.bf16.mxu0 0
        %2303 = vmatmul.mubr.bf16.gmra.mxu0 %v2245
        %v2304 = vpop.f32.mrf.mxu0
        %v2305 = vadd.f32 0.0, %v2304
        %v2306 = vpop.f32.mrf.mxu0
        %v2307 = vpop.f32.mrf.mxu0
        %v2308 = vadd.f32 0.0, %v2307
        %v2309 = vpop.f32.mrf.mxu0
        %2310 = vmatprep.mubr.bf16.mxu0 0
        %2311 = vmatmul.mubr.bf16.gmra.mxu0 %v2248
        %v2312 = vpop.f32.mrf.mxu0
        %v2313 = vadd.f32 0.0, %v2312
        %v2314 = vpop.f32.mrf.mxu0
        %v2315 = vpop.f32.mrf.mxu0
        %v2316 = vadd.f32 0.0, %v2315
        %v2317 = vpop.f32.mrf.mxu0
        %2318 = vdwg.mxu0
        %v2327 = vunpack.c.l.b16 %v1961
        %v2328 = vunpack.c.l.b16 %v1963
        %v2329 = vunpack.c.l.b16 %v1965
        %v2330 = vunpack.c.l.b16 %v1967
        %v2331 = vunpack.c.l.b16 %v1969
        %v2332 = vunpack.c.l.b16 %v1971
        %v2333 = vunpack.c.l.b16 %v1973
        %v2334 = vunpack.c.l.b16 %v1975
        %v2335 = vpack.c.b16 %v2328, %v2327
        %v2336 = vpack.c.b16 %v2330, %v2329
        %v2337 = vpack.c.b16 %v2332, %v2331
        %v2338 = vpack.c.b16 %v2334, %v2333
        %v2342 = vunpack.c.l.b16 %v1976
        %v2343 = vunpack.c.l.b16 %v1977
        %v2344 = vunpack.c.l.b16 %v1978
        %v2345 = vpack.c.b16 %v2343, %v2342
        %v2346 = vpack.c.b16 %v2344, %v2344
        %v2349 = vsel %vm2237, %v2335, 0
        %v2352 = vsel %vm2237, %v2336, 0
        %v2355 = vsel %vm2237, %v2337, 0
        %v2358 = vsel %vm2237, %v2338, 0
        %v2361 = vsel %vm2250, %v2346, 0
        %2363 = vmatprep.subr.bf16.mxu0 0
        %2364 = vmatpush1.bf16.msra.mxu0 0
        %2365 = vmatprep.subr.bf16.mxu0 0
        %2366 = vmatpush1.bf16.msra.mxu0 0
        %2367 = vmatprep.subr.bf16.mxu0 0
        %2368 = vmatpush1.bf16.msra.mxu0 0
        %2369 = vmatprep.subr.bf16.mxu0 0
        %2370 = vmatpush1.bf16.msra.mxu0 0
        %2371 = vmatprep.subr.bf16.mxu0 0
        %2372 = vmatpush1.bf16.msra.mxu0 0
        %2373 = vmatprep.subr.bf16.mxu0 0
        %2374 = vmatpush1.bf16.msra.mxu0 0
        %2375 = vmatprep.subr.bf16.mxu0 0
        %2376 = vmatpush1.bf16.msra.mxu0 %v2361
        %2377 = vmatprep.subr.bf16.mxu0 0
        %2378 = vmatpush1.bf16.msra.mxu0 %v2345
        %2379 = vmatprep.subr.bf16.mxu0 0
        %2380 = vmatpush2.bf16.msra.mxu0 0
        %2381 = vmatprep.subr.bf16.mxu0 0
        %2382 = vmatpush2.bf16.msra.mxu0 0
        %2383 = vmatprep.subr.bf16.mxu0 0
        %2384 = vmatpush2.bf16.msra.mxu0 0
        %2385 = vmatprep.subr.bf16.mxu0 0
        %2386 = vmatpush2.bf16.msra.mxu0 0
        %2387 = vmatprep.subr.bf16.mxu0 0
        %2388 = vmatpush2.bf16.msra.mxu0 0
        %2389 = vmatprep.subr.bf16.mxu0 0
        %2390 = vmatpush2.bf16.msra.mxu0 0
        %2391 = vmatprep.subr.bf16.mxu0 0
        %2392 = vmatpush2.bf16.msra.mxu0 0
        %2393 = vmatprep.subr.bf16.mxu0 0
        %2394 = vmatpush2.bf16.msra.mxu0 0
        %2395 = vmatprep.mubr.bf16.mxu0 0
        %2396 = vmatmul.mubr.bf16.gmra.mxu0 %v2349
        %v2397 = vpop.f32.mrf.mxu0
        %v2398 = vadd.f32 %v2289, %v2397
        %v2399 = vpop.f32.mrf.mxu0
        %v2400 = vpop.f32.mrf.mxu0
        %v2401 = vadd.f32 %v2292, %v2400
        %v2402 = vpop.f32.mrf.mxu0
        %2403 = vmatprep.mubr.bf16.mxu0 0
        %2404 = vmatmul.mubr.bf16.gmra.mxu0 %v2352
        %v2405 = vpop.f32.mrf.mxu0
        %v2406 = vadd.f32 %v2297, %v2405
        %v2407 = vpop.f32.mrf.mxu0
        %v2408 = vpop.f32.mrf.mxu0
        %v2409 = vadd.f32 %v2300, %v2408
        %v2410 = vpop.f32.mrf.mxu0
        %2411 = vmatprep.mubr.bf16.mxu0 0
        %2412 = vmatmul.mubr.bf16.gmra.mxu0 %v2355
        %v2413 = vpop.f32.mrf.mxu0
        %v2414 = vadd.f32 %v2305, %v2413
        %v2415 = vpop.f32.mrf.mxu0
        %v2416 = vpop.f32.mrf.mxu0
        %v2417 = vadd.f32 %v2308, %v2416
        %v2418 = vpop.f32.mrf.mxu0
        %2419 = vmatprep.mubr.bf16.mxu0 0
        %2420 = vmatmul.mubr.bf16.gmra.mxu0 %v2358
        %v2421 = vpop.f32.mrf.mxu0
        %v2422 = vadd.f32 %v2313, %v2421
        %v2423 = vpop.f32.mrf.mxu0
        %v2424 = vpop.f32.mrf.mxu0
        %v2425 = vadd.f32 %v2316, %v2424
        %v2426 = vpop.f32.mrf.mxu0
        %2427 = vdwg.mxu0
        %s2428 = scalar_lea.vmem [#allocation2], 16
        %v2429 = vld [vmem:[%s2428] sm:$0xf]
        %v2430 = vld [vmem:[%s2428 + $0x8] sm:$0xf]
        %v2431 = vld [vmem:[%s2428 + $0x10] sm:$0xf]
        %v2432 = vld [vmem:[%s2428 + $0x18] sm:$0xf]
        %v2433 = vld [vmem:[%s2428 + $0x20] sm:$0xf]
        %v2434 = vld [vmem:[%s2428 + $0x28] sm:$0xf]
        %v2435 = vld [vmem:[%s2428 + $0x30] sm:$0xf]
        %v2436 = vld [vmem:[%s2428 + $0x38] sm:$0xf]
        %v2437 = vld [vmem:[%s2428 + $0x4] sm:$0x1]
        %v2438 = vld [vmem:[%s2428 + $0xc] sm:$0x1]
        %v2439 = vld [vmem:[%s2428 + $0x14] sm:$0x1]
        %v2440 = vld [vmem:[%s2428 + $0x1c] sm:$0x1]
        %v2441 = vld [vmem:[%s2428 + $0x24] sm:$0x1]
        %v2442 = vld [vmem:[%s2428 + $0x2c] sm:$0x1]
        %v2443 = vld [vmem:[%s2428 + $0x34] sm:$0x1]
        %v2444 = vld [vmem:[%s2428 + $0x3c] sm:$0x1]
        %v2445 = vld [vmem:[%s2428] sm:$0xe]
        %v2446 = vld [vmem:[%s2428 + $0x8] sm:$0xe]
        %v2447 = vld [vmem:[%s2428 + $0x10] sm:$0xe]
        %v2448 = vld [vmem:[%s2428 + $0x18] sm:$0xe]
        %v2449 = vld [vmem:[%s2428 + $0x20] sm:$0xe]
        %v2450 = vld [vmem:[%s2428 + $0x28] sm:$0xe]
        %v2451 = vld [vmem:[%s2428 + $0x30] sm:$0xe]
        %v2452 = vld [vmem:[%s2428 + $0x38] sm:$0xe]
        %v2469 = vunpack.c.l.b16 %v2429
        %v2470 = vunpack.c.l.b16 %v2437
        %v2471 = vunpack.c.l.b16 %v2430
        %v2472 = vunpack.c.l.b16 %v2438
        %v2473 = vunpack.c.l.b16 %v2431
        %v2474 = vunpack.c.l.b16 %v2439
        %v2475 = vunpack.c.l.b16 %v2432
        %v2476 = vunpack.c.l.b16 %v2440
        %v2477 = vunpack.c.l.b16 %v2433
        %v2478 = vunpack.c.l.b16 %v2441
        %v2479 = vunpack.c.l.b16 %v2434
        %v2480 = vunpack.c.l.b16 %v2442
        %v2481 = vunpack.c.l.b16 %v2435
        %v2482 = vunpack.c.l.b16 %v2443
        %v2483 = vunpack.c.l.b16 %v2436
        %v2484 = vunpack.c.l.b16 %v2444
        %v2485 = vpack.c.b16 %v2470, %v2469
        %v2486 = vpack.c.b16 %v2472, %v2471
        %v2487 = vpack.c.b16 %v2474, %v2473
        %v2488 = vpack.c.b16 %v2476, %v2475
        %v2489 = vpack.c.b16 %v2478, %v2477
        %v2490 = vpack.c.b16 %v2480, %v2479
        %v2491 = vpack.c.b16 %v2482, %v2481
        %v2492 = vpack.c.b16 %v2484, %v2483
        %v2494 = vshrl.u32 %v2485, 16
        %v2496 = vshll.u32 %v2485, 16
        %v2498 = vrot.slane %v2496, 1
        %v2499 = vor.u32 %v2494, %v2498
        %v2501 = vshrl.u32 %v2486, 16
        %v2503 = vshll.u32 %v2486, 16
        %v2505 = vrot.slane %v2503, 1
        %v2506 = vor.u32 %v2501, %v2505
        %v2508 = vshrl.u32 %v2487, 16
        %v2510 = vshll.u32 %v2487, 16
        %v2512 = vrot.slane %v2510, 1
        %v2513 = vor.u32 %v2508, %v2512
        %v2515 = vshrl.u32 %v2488, 16
        %v2517 = vshll.u32 %v2488, 16
        %v2519 = vrot.slane %v2517, 1
        %v2520 = vor.u32 %v2515, %v2519
        %v2522 = vshrl.u32 %v2489, 16
        %v2524 = vshll.u32 %v2489, 16
        %v2526 = vrot.slane %v2524, 1
        %v2527 = vor.u32 %v2522, %v2526
        %v2529 = vshrl.u32 %v2490, 16
        %v2531 = vshll.u32 %v2490, 16
        %v2533 = vrot.slane %v2531, 1
        %v2534 = vor.u32 %v2529, %v2533
        %v2536 = vshrl.u32 %v2491, 16
        %v2538 = vshll.u32 %v2491, 16
        %v2540 = vrot.slane %v2538, 1
        %v2541 = vor.u32 %v2536, %v2540
        %v2543 = vshrl.u32 %v2492, 16
        %v2545 = vshll.u32 %v2492, 16
        %v2547 = vrot.slane %v2545, 1
        %v2548 = vor.u32 %v2543, %v2547
        %2549 = vrot.lane.b32.xlu0 %v2499, 8
        %v2550 = vpop.permute.xlu0 %2549
        %2551 = vrot.lane.b32.xlu0 %v2506, 8
        %v2552 = vpop.permute.xlu0 %2551
        %2553 = vrot.lane.b32.xlu0 %v2513, 8
        %v2554 = vpop.permute.xlu0 %2553
        %2555 = vrot.lane.b32.xlu0 %v2520, 8
        %v2556 = vpop.permute.xlu0 %2555
        %2557 = vrot.lane.b32.xlu0 %v2527, 8
        %v2558 = vpop.permute.xlu0 %2557
        %2559 = vrot.lane.b32.xlu0 %v2534, 8
        %v2560 = vpop.permute.xlu0 %2559
        %2561 = vrot.lane.b32.xlu0 %v2541, 8
        %v2562 = vpop.permute.xlu0 %2561
        %2563 = vrot.lane.b32.xlu0 %v2548, 8
        %v2564 = vpop.permute.xlu0 %2563
        %v2573 = vunpack.c.l.b16 %v2445
        %v2574 = vunpack.c.l.b16 %v2446
        %v2575 = vunpack.c.l.b16 %v2447
        %v2576 = vunpack.c.l.b16 %v2448
        %v2577 = vunpack.c.l.b16 %v2449
        %v2578 = vunpack.c.l.b16 %v2450
        %v2579 = vunpack.c.l.b16 %v2451
        %v2580 = vunpack.c.l.b16 %v2452
        %v2581 = vpack.c.b16 %v2470, %v2573
        %v2582 = vpack.c.b16 %v2472, %v2574
        %v2583 = vpack.c.b16 %v2474, %v2575
        %v2584 = vpack.c.b16 %v2476, %v2576
        %v2585 = vpack.c.b16 %v2478, %v2577
        %v2586 = vpack.c.b16 %v2480, %v2578
        %v2587 = vpack.c.b16 %v2482, %v2579
        %v2588 = vpack.c.b16 %v2484, %v2580
        %v2589 = vrot.slane %v2581, 1
        %v2590 = vrot.slane %v2582, 1
        %v2591 = vrot.slane %v2583, 1
        %v2592 = vrot.slane %v2584, 1
        %v2593 = vrot.slane %v2585, 1
        %v2594 = vrot.slane %v2586, 1
        %v2595 = vrot.slane %v2587, 1
        %v2596 = vrot.slane %v2588, 1
        %2597 = vrot.lane.b32.xlu0 %v2589, 16
        %v2598 = vpop.permute.xlu0 %2597
        %2599 = vrot.lane.b32.xlu0 %v2590, 16
        %v2600 = vpop.permute.xlu0 %2599
        %2601 = vrot.lane.b32.xlu0 %v2591, 16
        %v2602 = vpop.permute.xlu0 %2601
        %2603 = vrot.lane.b32.xlu0 %v2592, 16
        %v2604 = vpop.permute.xlu0 %2603
        %2605 = vrot.lane.b32.xlu0 %v2593, 16
        %v2606 = vpop.permute.xlu0 %2605
        %2607 = vrot.lane.b32.xlu0 %v2594, 16
        %v2608 = vpop.permute.xlu0 %2607
        %2609 = vrot.lane.b32.xlu0 %v2595, 16
        %v2610 = vpop.permute.xlu0 %2609
        %2611 = vrot.lane.b32.xlu0 %v2596, 16
        %v2612 = vpop.permute.xlu0 %2611
        %v2615 = vsel %vm498, %v2429, %v2550
        %v2618 = vsel %vm498, %v2430, %v2552
        %v2621 = vsel %vm498, %v2431, %v2554
        %v2624 = vsel %vm498, %v2432, %v2556
        %v2627 = vsel %vm498, %v2433, %v2558
        %v2630 = vsel %vm498, %v2434, %v2560
        %v2633 = vsel %vm498, %v2435, %v2562
        %v2636 = vsel %vm498, %v2436, %v2564
        %v2638 = vsel %vm1959, %v2615, %v2598
        %v2640 = vsel %vm1959, %v2618, %v2600
        %v2642 = vsel %vm1959, %v2621, %v2602
        %v2644 = vsel %vm1959, %v2624, %v2604
        %v2646 = vsel %vm1959, %v2627, %v2606
        %v2648 = vsel %vm1959, %v2630, %v2608
        %v2650 = vsel %vm1959, %v2633, %v2610
        %v2652 = vsel %vm1959, %v2636, %v2612
        %s2653 = scalar_lea.vmem %s3, 24
        %v2654 = vld [vmem:[%s2653] sm:$0xf]
        %v2655 = vld [vmem:[%s2653 + $0x4] sm:$0xf]
        %v2656 = vld [vmem:[%s2653 + $0x8] sm:$0xf]
        %v2665 = vunpack.c.l.b16 %v2638
        %v2666 = vunpack.c.l.b16 %v2640
        %v2667 = vunpack.c.l.b16 %v2642
        %v2668 = vunpack.c.l.b16 %v2644
        %v2669 = vunpack.c.l.b16 %v2646
        %v2670 = vunpack.c.l.b16 %v2648
        %v2671 = vunpack.c.l.b16 %v2650
        %v2672 = vunpack.c.l.b16 %v2652
        %v2673 = vpack.c.b16 %v2666, %v2665
        %v2674 = vpack.c.b16 %v2668, %v2667
        %v2675 = vpack.c.b16 %v2670, %v2669
        %v2676 = vpack.c.b16 %v2672, %v2671
        %v2680 = vunpack.c.l.b16 %v2654
        %v2681 = vunpack.c.l.b16 %v2655
        %v2682 = vunpack.c.l.b16 %v2656
        %v2683 = vpack.c.b16 %v2681, %v2680
        %v2684 = vpack.c.b16 %v2682, %v2682
        %v2687 = vsel %vm2237, %v2673, 0
        %v2690 = vsel %vm2237, %v2674, 0
        %v2693 = vsel %vm2237, %v2675, 0
        %v2696 = vsel %vm2237, %v2676, 0
        %v2699 = vsel %vm2250, %v2684, 0
        %2701 = vmatprep.subr.bf16.mxu0 0
        %2702 = vmatpush1.bf16.msra.mxu0 0
        %2703 = vmatprep.subr.bf16.mxu0 0
        %2704 = vmatpush1.bf16.msra.mxu0 0
        %2705 = vmatprep.subr.bf16.mxu0 0
        %2706 = vmatpush1.bf16.msra.mxu0 0
        %2707 = vmatprep.subr.bf16.mxu0 0
        %2708 = vmatpush1.bf16.msra.mxu0 0
        %2709 = vmatprep.subr.bf16.mxu0 0
        %2710 = vmatpush1.bf16.msra.mxu0 0
        %2711 = vmatprep.subr.bf16.mxu0 0
        %2712 = vmatpush1.bf16.msra.mxu0 0
        %2713 = vmatprep.subr.bf16.mxu0 0
        %2714 = vmatpush1.bf16.msra.mxu0 %v2699
        %2715 = vmatprep.subr.bf16.mxu0 0
        %2716 = vmatpush1.bf16.msra.mxu0 %v2683
        %2717 = vmatprep.subr.bf16.mxu0 0
        %2718 = vmatpush2.bf16.msra.mxu0 0
        %2719 = vmatprep.subr.bf16.mxu0 0
        %2720 = vmatpush2.bf16.msra.mxu0 0
        %2721 = vmatprep.subr.bf16.mxu0 0
        %2722 = vmatpush2.bf16.msra.mxu0 0
        %2723 = vmatprep.subr.bf16.mxu0 0
        %2724 = vmatpush2.bf16.msra.mxu0 0
        %2725 = vmatprep.subr.bf16.mxu0 0
        %2726 = vmatpush2.bf16.msra.mxu0 0
        %2727 = vmatprep.subr.bf16.mxu0 0
        %2728 = vmatpush2.bf16.msra.mxu0 0
        %2729 = vmatprep.subr.bf16.mxu0 0
        %2730 = vmatpush2.bf16.msra.mxu0 0
        %2731 = vmatprep.subr.bf16.mxu0 0
        %2732 = vmatpush2.bf16.msra.mxu0 0
        %2733 = vmatprep.mubr.bf16.mxu0 0
        %2734 = vmatmul.mubr.bf16.gmra.mxu0 %v2687
        %v2735 = vpop.f32.mrf.mxu0
        %v2736 = vadd.f32 0.0, %v2735
        %v2737 = vpop.f32.mrf.mxu0
        %v2738 = vpop.f32.mrf.mxu0
        %v2739 = vadd.f32 0.0, %v2738
        %v2740 = vpop.f32.mrf.mxu0
        %2741 = vmatprep.mubr.bf16.mxu0 0
        %2742 = vmatmul.mubr.bf16.gmra.mxu0 %v2690
        %v2743 = vpop.f32.mrf.mxu0
        %v2744 = vadd.f32 0.0, %v2743
        %v2745 = vpop.f32.mrf.mxu0
        %v2746 = vpop.f32.mrf.mxu0
        %v2747 = vadd.f32 0.0, %v2746
        %v2748 = vpop.f32.mrf.mxu0
        %2749 = vmatprep.mubr.bf16.mxu0 0
        %2750 = vmatmul.mubr.bf16.gmra.mxu0 %v2693
        %v2751 = vpop.f32.mrf.mxu0
        %v2752 = vadd.f32 0.0, %v2751
        %v2753 = vpop.f32.mrf.mxu0
        %v2754 = vpop.f32.mrf.mxu0
        %v2755 = vadd.f32 0.0, %v2754
        %v2756 = vpop.f32.mrf.mxu0
        %2757 = vmatprep.mubr.bf16.mxu0 0
        %2758 = vmatmul.mubr.bf16.gmra.mxu0 %v2696
        %v2759 = vpop.f32.mrf.mxu0
        %v2760 = vadd.f32 0.0, %v2759
        %v2761 = vpop.f32.mrf.mxu0
        %v2762 = vpop.f32.mrf.mxu0
        %v2763 = vadd.f32 0.0, %v2762
        %v2764 = vpop.f32.mrf.mxu0
        %2765 = vdwg.mxu0
        %v2766 = vadd.f32 %v2398, %v2736
        %v2767 = vadd.f32 %v2401, %v2739
        %v2768 = vadd.f32 %v2406, %v2744
        %v2769 = vadd.f32 %v2409, %v2747
        %v2770 = vadd.f32 %v2414, %v2752
        %v2771 = vadd.f32 %v2417, %v2755
        %v2772 = vadd.f32 %v2422, %v2760
        %v2773 = vadd.f32 %v2425, %v2763
        %v2774 = vld [vmem:[%s4] sm:$0x1]
        %v2776 = vlaneseq
        %v2777 = vshrl.u32 %v2776, 7
        %v2778 = vsub.s32 0, %v2777
        %v2779 = vrot.slane %v2774, %v2778
        %v2781 = vadd.f32 %v2766, %v2779
        %v2782 = vadd.f32 %v2767, %v2779
        %v2783 = vadd.f32 %v2768, %v2779
        %v2784 = vadd.f32 %v2769, %v2779
        %v2785 = vadd.f32 %v2770, %v2779
        %v2786 = vadd.f32 %v2771, %v2779
        %v2787 = vadd.f32 %v2772, %v2779
        %v2788 = vadd.f32 %v2773, %v2779
        %v2789 = vmax.f32 %v2781, 0.0
        %v2790 = vmax.f32 %v2782, 0.0
        %v2791 = vmax.f32 %v2783, 0.0
        %v2792 = vmax.f32 %v2784, 0.0
        %v2793 = vmax.f32 %v2785, 0.0
        %v2794 = vmax.f32 %v2786, 0.0
        %v2795 = vmax.f32 %v2787, 0.0
        %v2796 = vmax.f32 %v2788, 0.0
        %2797 = vst.msk [vmem:[%s236] sm:$0xff] %vm1959, %v2789
        %2798 = vst.msk [vmem:[%s236 + $0x8] sm:$0xff] %vm1959, %v2790
        %2799 = vst.msk [vmem:[%s236 + $0x10] sm:$0xff] %vm1959, %v2791
        %2800 = vst.msk [vmem:[%s236 + $0x18] sm:$0xff] %vm1959, %v2792
        %2801 = vst.msk [vmem:[%s236 + $0x20] sm:$0xff] %vm1959, %v2793
        %2802 = vst.msk [vmem:[%s236 + $0x28] sm:$0xff] %vm1959, %v2794
        %2803 = vst.msk [vmem:[%s236 + $0x30] sm:$0xff] %vm1959, %v2795
        %2804 = vst.msk [vmem:[%s236 + $0x38] sm:$0xff] %vm1959, %v2796
        %s2805 = sand.u32 %s153, 1
        %s2806 = scalar_lea.sflag [#allocation4], %s2805
        %s2807 = sand.u32 %s153, 1
        %s2808 = smul.addr %s2807, 64
        %s2809 = scalar_lea.vmem [#allocation3], %s2808
        // Predicated region
        $region45: #{double_conv_block.1} parent=39 // pred_check
          %p2810 = pneg %p163
        $region46: #{double_conv_block.1} parent=39 // pred_check_branch
          %2812 = sbr.rel (%p2810) target = $region48
        $region47: #{double_conv_block.1} parent=39 // pred_region
          %s2813 = smul.u32 8, %s24
          %s2815 = ssub.s32 1024, 1024
          %2816 = vsyncadd %s2806, %s2815
          %s2817 = smul.addr %s23, 8
          %s2818 = sadd.s32 %s2813, %s2817
          %s2819 = smul.addr %s2818, 128
          %s2820 = scalar_lea.hbm %s5, %s2819
          %s2821 = sshll.u32 %s2809, 4
          %s2822 = int_to_ptr.vmem [resolvable:$true] %s2821
          %2827 = dma.vmem_to_hbm [thread:$0]  %s2822, 1024, %s2820, %s2806, 128, 128, 8
        $region48: #{double_conv_block.1} parent=39 // pred_fallthru
          _
      $region40: #{double_conv_block.1} parent=5 // pred_fallthru
        _
      %p2828 = scmp.le.s32.totalorder 2, %s14
      // Predicated region
      $region49: #{double_conv_block.1} parent=5 // pred_check
        %p2829 = pneg %p2828
      $region50: #{double_conv_block.1} parent=5 // pred_check_branch
        %2831 = sbr.rel (%p2829) target = $region52
      $region51: #{double_conv_block.1} parent=5 // pred_region
        %s2832 = ssub.s32 %s14, 2
        // Predicated region
        $region53: #{double_conv_block.1} parent=51 // pred_check
          %p2833 = pneg %p169
        $region54: #{double_conv_block.1} parent=51 // pred_check_branch
          %2835 = sbr.rel (%p2833) target = $region56
        $region55: #{double_conv_block.1} parent=51 // pred_region
          %s2836 = sand.u32 %s154, 1
          %s2837 = scalar_lea.sflag [#allocation4], %s2836
          %s2838 = sand.u32 %s154, 1
          %s2839 = smul.addr %s2838, 64
          %s2840 = scalar_lea.vmem [#allocation3], %s2839
          %2841 = dma.done %s2837, 1024
        $region56: #{double_conv_block.1} parent=51 // pred_fallthru
          _
      $region52: #{double_conv_block.1} parent=5 // pred_fallthru
        _
    $region6: #{double_conv_block.1} parent=1 // loop_footer
      %s18 = sadd.s32 1, %s14
    $region7: #{double_conv_block.1} parent=1 // loop_footer_branch
      %13 = sbr.rel target = $region3
    $region8: #{double_conv_block.1} parent=1 // loop_exit
      _
    %2842 = vsyncpa [#allocation4], 1
    %s2843 = scalar_lea.sflag [#allocation4], 1
    %2844 = vsyncpa %s2843, 1

</llo_original>
